<compile_context>
chip_gen: v7x
topology: tpu7x:2x2x1
jax: 0.10.0
libtpu: 0.0.40
codegen_flags: <defaults>
</compile_context>

<pallas_src>
import functools

import jax
import jax.numpy as jnp
import numpy as np
from jax import lax
from jax.experimental import pallas as pl
from jax.experimental.pallas import tpu as pltpu


def _round_up(x, m):
    return ((x + m - 1) // m) * m


def hnn_kernel(x0_ref, a_ref, cw_ref, bias_ref, mask_ref, eps_ref, out_ref, *,
               k_pad, n_nodes, n_iterations, mxu_dtype):
    """One grid step = one batch tile; all Hopfield iterations run in-kernel.

    x0_ref  : (C, TB, Ppad) f32     encoded input (lane-scattered, batch tile)
    a_ref   : (C, Ppad, Ppad)       A = Mw @ Mw^T (lane-scattered, mxu_dtype)
    cw_ref  : (C, 1, Kpad) f32      softmax(convex_w, -1)^T (zero-padded lanes)
    bias_ref: (1, Kpad) f32
    mask_ref: (1, 1, Ppad) f32      1.0 at valid pattern lanes, 0.0 at padding
    eps_ref : (n_it, C, TB, Ppad)   pre-drawn gaussian noise * exp(eta), f32
    out_ref : (TB, Kpad) f32
    """
    f32 = jnp.float32
    a = a_ref[...]                       # (C, Ppad, Ppad), mxu_dtype
    mask = mask_ref[...]                 # (1, 1, Ppad)
    neg_pad = (1.0 - mask) * 1e30        # big negative offset on padded lanes

    def body(j, x):
        # masked softmax over the (padded) pattern axis
        m = jnp.max(x - neg_pad, axis=-1, keepdims=True)
        e = jnp.exp(x - m) * mask
        s = jnp.sum(e, axis=-1, keepdims=True)
        p = e * pl.reciprocal(s, approx=True)
        # additive noise (eps already carries exp(eta)); clamp var >= 0 so the
        # approx-reciprocal softmax can never push sqrt() into NaN territory.
        var = jnp.maximum(p * (1.0 - p), 0.0)
        p = p + eps_ref[j] * jnp.sqrt(var)
        # Hopfield update x <- p @ A^T (batched over channels, MXU, f32 acc).
        return jnp.einsum('cpi,cbi->cbp', a, p.astype(mxu_dtype),
                          preferred_element_type=f32)

    x = lax.fori_loop(0, n_iterations, body, x0_ref[...],
                      unroll=(n_iterations <= 8))

    # Max over nodes: node-major layout => each node's class vector is a
    # 128-lane-aligned slice of width Kpad; elementwise max, no matmuls.
    xm = x[:, :, 0:k_pad]
    for d in range(1, n_nodes):
        xm = jnp.maximum(xm, x[:, :, d * k_pad:(d + 1) * k_pad])
    # Convex channel merge + bias (padded class lanes have cw == 0).
    out = jnp.sum(xm * cw_ref[...], axis=0)          # (TB, Kpad)
    out_ref[...] = out + bias_ref[...]


def make_hnn_params(key, n_neurons, n_classes, n_nodes, n_channels,
                    M_init_noise=0.1, C_init_noise=0.1,
                    eta_init_noise=0.1, bias_init_noise=0.1):
    P = n_classes * n_nodes
    k = jax.random.split(key, 5)
    return {
        'matrix_encoder': jax.random.normal(k[0], (n_channels, n_neurons, P), jnp.float32),
        'matrix_w': jnp.tanh(M_init_noise *
                             jax.random.normal(k[1], (n_channels, P, P), jnp.float32)),
        'convex_w': jnp.tanh(C_init_noise *
                             jax.random.normal(k[2], (n_classes, n_channels), jnp.float32)),
        'eta_w': eta_init_noise * jax.random.normal(k[3], (n_channels,), jnp.float32) - 3.0,
        'bias': bias_init_noise * jax.random.normal(k[4], (n_classes,), jnp.float32),
    }


def hnn_forward(x, params, eps, *, n_classes, n_nodes, n_iterations,
                tb=None, mxu_dtype=jnp.bfloat16):
    """x: (B, C, n_neurons); eps: (n_iterations, B, C, n_patterns) gaussian noise.

    Returns (B, n_classes), matching HNN.forward semantics.
    """
    B, C, N = x.shape
    K = n_classes
    P = K * n_nodes
    assert eps.shape == (n_iterations, B, C, P)

    f32 = jnp.float32
    hp = lax.Precision.HIGHEST

    # ---- lane-aligned, node-major layout of the pattern axis ----------------
    # original pattern index p = class*n_nodes + node  ->  node*K_pad + class,
    # each node segment zero-padded to K_pad lanes (multiple of 128).
    K_pad = _round_up(K, 128)
    P_pad = n_nodes * K_pad
    orig = np.arange(P)
    newpos = (orig % n_nodes) * K_pad + (orig // n_nodes)
    S_np = np.zeros((P, P_pad), np.float32)
    S_np[orig, newpos] = 1.0
    S = jnp.asarray(S_np)                                    # lane scatter matrix
    mask = jnp.sum(S, axis=0).reshape(1, 1, P_pad)           # valid-lane mask

    # ---- batch tiling (MXU M dimension) --------------------------------------
    # TODO(synk): raise the cap to 256 for the 256x256 MXU on v6e/v7x and split
    # over channels when B_pad // tb == 1 so both v7x TensorCores are used.
    if tb is None:
        tb = min(128, _round_up(B, 8))
    B_pad = _round_up(B, tb)
    n_btiles = B_pad // tb

    # ---- hoisted, parameter-only / batch-level preprocessing (plain XLA) -----
    menc = params['matrix_encoder'].astype(f32)
    mw = params['matrix_w'].astype(f32)
    x0 = jnp.einsum('bcn,cnp->cbp', x.astype(f32), menc, precision=hp)      # (C,B,P)
    A = jnp.einsum('cip,cjp->cij', mw, mw, precision=hp)                    # (C,P,P)
    exp_eta = jnp.exp(params['eta_w'].astype(f32)).reshape(1, C, 1, 1)
    eps_t = jnp.transpose(eps.astype(f32), (0, 2, 1, 3)) * exp_eta          # (it,C,B,P)

    x0_pad = jnp.einsum('cbp,pq->cbq', x0, S, precision=hp)                 # (C,B,Ppad)
    a_pad = jnp.einsum('pq,cpr,rs->cqs', S, A, S, precision=hp)             # (C,Ppad,Ppad)
    eps_pad = jnp.einsum('icbp,pq->icbq', eps_t, S, precision=hp)           # (it,C,B,Ppad)

    x0_pad = jnp.pad(x0_pad, ((0, 0), (0, B_pad - B), (0, 0)))
    eps_pad = jnp.pad(eps_pad, ((0, 0), (0, 0), (0, B_pad - B), (0, 0)))
    a_pad = a_pad.astype(mxu_dtype)

    cw_soft = jnp.transpose(jax.nn.softmax(params['convex_w'].astype(f32), axis=-1))
    cw_pad = jnp.pad(cw_soft[:, None, :], ((0, 0), (0, 0), (0, K_pad - K)))  # (C,1,Kpad)
    bias_pad = jnp.pad(params['bias'].astype(f32)[None, :], ((0, 0), (0, K_pad - K)))

    kernel = functools.partial(hnn_kernel, k_pad=K_pad, n_nodes=n_nodes,
                               n_iterations=n_iterations, mxu_dtype=mxu_dtype)

    out = pl.pallas_call(
        kernel,
        out_shape=jax.ShapeDtypeStruct((B_pad, K_pad), f32),
        grid_spec=pltpu.PrefetchScalarGridSpec(
            num_scalar_prefetch=0,
            grid=(n_btiles,),
            in_specs=[
                pl.BlockSpec((C, tb, P_pad), lambda b: (0, b, 0)),           # x0 tile
                pl.BlockSpec((C, P_pad, P_pad), lambda b: (0, 0, 0)),        # A (const)
                pl.BlockSpec((C, 1, K_pad), lambda b: (0, 0, 0)),            # softmax(Cw)^T
                pl.BlockSpec((1, K_pad), lambda b: (0, 0)),                  # bias
                pl.BlockSpec((1, 1, P_pad), lambda b: (0, 0, 0)),            # lane mask
                pl.BlockSpec((n_iterations, C, tb, P_pad),
                             lambda b: (0, 0, b, 0)),                        # eps*exp(eta)
            ],
            out_specs=pl.BlockSpec((tb, K_pad), lambda b: (b, 0)),
        ),
        compiler_params=pltpu.CompilerParams(
            dimension_semantics=("parallel",),
            vmem_limit_bytes=32 * 1024 * 1024,
        ),
    )(x0_pad, a_pad, cw_pad, bias_pad, mask, eps_pad)

    return out[:B, :K]


def hnn_reference(x, params, eps, *, n_classes, n_nodes, n_iterations):
    """Pure-JAX reference mirroring the PyTorch forward (same pre-drawn eps)."""
    hp = lax.Precision.HIGHEST
    x = jnp.einsum('bcn,cnp->bcp', x, params['matrix_encoder'], precision=hp)
    A = jnp.einsum('cip,cjp->cij', params['matrix_w'], params['matrix_w'], precision=hp)
    for it in range(n_iterations):
        p = jax.nn.softmax(x, axis=-1)
        p = p + eps[it] * jnp.sqrt(p * (1.0 - p)) * jnp.exp(params['eta_w']).reshape(1, -1, 1)
        x = jnp.einsum('cpi,bci->bcp', A, p, precision=hp)
    B, C, _ = x.shape
    x = jnp.max(x.reshape(B, C, n_classes, n_nodes), axis=-1)
    x = jnp.einsum('bck,kc->bk', x, jax.nn.softmax(params['convex_w'], axis=-1), precision=hp)
    return x + params['bias']


if __name__ == "__main__":
    # Small shapes consistent with the module's forward signature.
    B, C, N = 2, 4, 16                  # batch, n_channels, n_neurons
    n_classes, n_nodes, n_iterations = 4, 2, 3
    P = n_classes * n_nodes             # n_patterns = 8

    key = jax.random.PRNGKey(0)
    kp, kx, ke = jax.random.split(key, 3)

    params = make_hnn_params(kp, N, n_classes, n_nodes, C)
    x = jax.random.normal(kx, (B, C, N), jnp.float32)
    # torch.randn_like(p) noise for each iteration, pre-drawn deterministically
    # so the kernel and the reference see identical noise.
    eps = jax.random.normal(ke, (n_iterations, B, C, P), jnp.float32)

    out = hnn_forward(x, params, eps, n_classes=n_classes, n_nodes=n_nodes,
                      n_iterations=n_iterations)
    out = jax.block_until_ready(out)

    ref = hnn_reference(x, params, eps, n_classes=n_classes, n_nodes=n_nodes,
                        n_iterations=n_iterations)

    assert out.shape == (B, n_classes)
    assert bool(jnp.all(jnp.isfinite(out)))
    # bf16 MXU operands + approx-reciprocal softmax denominator vs f32 reference.
    np.testing.assert_allclose(np.asarray(out), np.asarray(ref), rtol=2e-2, atol=2e-2)
    print("KERNEL_OK")
</pallas_src>

<mosaic_0001>
module attributes {stable_mosaic.version = 11 : i64} {
  func.func @hnn_kernel(%arg0: i32, %arg1: memref<4x8x256xf32, #tpu.memory_space<vmem>>, %arg2: memref<4x256x256xbf16, #tpu.memory_space<vmem>>, %arg3: memref<4x1x128xf32, #tpu.memory_space<vmem>>, %arg4: memref<1x128xf32, #tpu.memory_space<vmem>>, %arg5: memref<1x1x256xf32, #tpu.memory_space<vmem>>, %arg6: memref<3x4x8x256xf32, #tpu.memory_space<vmem>>, %arg7: memref<8x128xf32, #tpu.memory_space<vmem>>) attributes {dimension_semantics = [#tpu.dimension_semantics<parallel>], iteration_bounds = array<i64: 1>, scalar_prefetch = 0 : i64, scratch_operands = 0 : i64, tpu.core_type = #tpu.core_type<tc>, window_params = [{transform_indices = @transform_0, window_bounds = array<i64: 4, 8, 256>}, {pipeline_mode = #tpu.pipeline_mode<synchronous>, transform_indices = @transform_1, window_bounds = array<i64: 4, 256, 256>}, {pipeline_mode = #tpu.pipeline_mode<synchronous>, transform_indices = @transform_2, window_bounds = array<i64: 4, 1, 128>}, {pipeline_mode = #tpu.pipeline_mode<synchronous>, transform_indices = @transform_3, window_bounds = array<i64: 1, 128>}, {pipeline_mode = #tpu.pipeline_mode<synchronous>, transform_indices = @transform_4, window_bounds = array<i64: 1, 1, 256>}, {transform_indices = @transform_5, window_bounds = array<i64: 3, 4, 8, 256>}, {transform_indices = @transform_6, window_bounds = array<i64: 8, 128>}]} {
    %c0 = arith.constant 0 : index
    %c0_0 = arith.constant 0 : index
    %c0_1 = arith.constant 0 : index
    %0 = vector.load %arg2[%c0, %c0_0, %c0_1] : memref<4x256x256xbf16, #tpu.memory_space<vmem>>, vector<4x256x256xbf16>
    %c0_2 = arith.constant 0 : index
    %c0_3 = arith.constant 0 : index
    %c0_4 = arith.constant 0 : index
    %1 = vector.load %arg5[%c0_2, %c0_3, %c0_4] : memref<1x1x256xf32, #tpu.memory_space<vmem>>, vector<1x1x256xf32>
    %cst = arith.constant 1.000000e+00 : f32
    %2 = vector.broadcast %cst : f32 to vector<1x1x256xf32>
    %3 = arith.subf %2, %1 : vector<1x1x256xf32>
    %cst_5 = arith.constant 1.000000e+30 : f32
    %4 = vector.broadcast %cst_5 : f32 to vector<1x1x256xf32>
    %5 = arith.mulf %3, %4 : vector<1x1x256xf32>
    %c0_6 = arith.constant 0 : index
    %c0_7 = arith.constant 0 : index
    %c0_8 = arith.constant 0 : index
    %6 = vector.load %arg1[%c0_6, %c0_7, %c0_8] : memref<4x8x256xf32, #tpu.memory_space<vmem>>, vector<4x8x256xf32>
    %c0_i32 = arith.constant 0 : i32
    %7 = vector.broadcast %5 : vector<1x1x256xf32> to vector<4x8x256xf32>
    %8 = arith.subf %6, %7 : vector<4x8x256xf32>
    %cst_9 = arith.constant dense<0xFF800000> : vector<4x8xf32>
    %9 = vector.multi_reduction <maximumf>, %8, %cst_9 [2] : vector<4x8x256xf32> to vector<4x8xf32>
    %10 = vector.shape_cast %9 : vector<4x8xf32> to vector<4x8x1xf32>
    %11 = vector.broadcast %10 : vector<4x8x1xf32> to vector<4x8x256xf32>
    %12 = arith.subf %6, %11 : vector<4x8x256xf32>
    %13 = math.exp %12 : vector<4x8x256xf32>
    %14 = vector.broadcast %1 : vector<1x1x256xf32> to vector<4x8x256xf32>
    %15 = arith.mulf %13, %14 : vector<4x8x256xf32>
    %cst_10 = arith.constant dense<0.000000e+00> : vector<4x8xf32>
    %16 = vector.multi_reduction <add>, %15, %cst_10 [2] : vector<4x8x256xf32> to vector<4x8xf32>
    %17 = vector.shape_cast %16 : vector<4x8xf32> to vector<4x8x1xf32>
    %18 = tpu.reciprocal %17 {approx = true} : vector<4x8x1xf32> -> vector<4x8x1xf32>
    %19 = vector.broadcast %18 : vector<4x8x1xf32> to vector<4x8x256xf32>
    %20 = arith.mulf %15, %19 : vector<4x8x256xf32>
    %cst_11 = arith.constant 1.000000e+00 : f32
    %21 = vector.broadcast %cst_11 : f32 to vector<4x8x256xf32>
    %22 = arith.subf %21, %20 : vector<4x8x256xf32>
    %23 = arith.mulf %20, %22 : vector<4x8x256xf32>
    %cst_12 = arith.constant 0.000000e+00 : f32
    %24 = vector.broadcast %cst_12 : f32 to vector<4x8x256xf32>
    %25 = arith.maximumf %23, %24 : vector<4x8x256xf32>
    %26 = arith.index_cast %c0_i32 : i32 to index
    %c0_13 = arith.constant 0 : index
    %c0_14 = arith.constant 0 : index
    %c0_15 = arith.constant 0 : index
    %27 = vector.load %arg6[%26, %c0_13, %c0_14, %c0_15] : memref<3x4x8x256xf32, #tpu.memory_space<vmem>>, vector<1x4x8x256xf32>
    %28 = vector.shape_cast %27 : vector<1x4x8x256xf32> to vector<4x8x256xf32>
    %29 = math.sqrt %25 : vector<4x8x256xf32>
    %30 = arith.mulf %28, %29 : vector<4x8x256xf32>
    %31 = arith.addf %20, %30 : vector<4x8x256xf32>
    %32 = arith.truncf %31 : vector<4x8x256xf32> to vector<4x8x256xbf16>
    "tpu.trace_start"() <{level = 10 : i32, message = "cpi,cbi->cbp"}> : () -> ()
    %cst_16 = arith.constant dense<0.000000e+00> : vector<4x8x256xf32>
    %33 = tpu.matmul %32, %0, %cst_16 {dimension_numbers = #tpu.dot_dimension_numbers<[2], [2], [1], [1], [0, 0, 0, 1, 1, 1], [0], [0]>} : vector<4x8x256xbf16>, vector<4x256x256xbf16>, vector<4x8x256xf32> -> vector<4x8x256xf32>
    "tpu.trace_stop"() : () -> ()
    %c1_i32 = arith.constant 1 : i32
    %34 = vector.broadcast %5 : vector<1x1x256xf32> to vector<4x8x256xf32>
    %35 = arith.subf %33, %34 : vector<4x8x256xf32>
    %cst_17 = arith.constant dense<0xFF800000> : vector<4x8xf32>
    %36 = vector.multi_reduction <maximumf>, %35, %cst_17 [2] : vector<4x8x256xf32> to vector<4x8xf32>
    %37 = vector.shape_cast %36 : vector<4x8xf32> to vector<4x8x1xf32>
    %38 = vector.broadcast %37 : vector<4x8x1xf32> to vector<4x8x256xf32>
    %39 = arith.subf %33, %38 : vector<4x8x256xf32>
    %40 = math.exp %39 : vector<4x8x256xf32>
    %41 = vector.broadcast %1 : vector<1x1x256xf32> to vector<4x8x256xf32>
    %42 = arith.mulf %40, %41 : vector<4x8x256xf32>
    %cst_18 = arith.constant dense<0.000000e+00> : vector<4x8xf32>
    %43 = vector.multi_reduction <add>, %42, %cst_18 [2] : vector<4x8x256xf32> to vector<4x8xf32>
    %44 = vector.shape_cast %43 : vector<4x8xf32> to vector<4x8x1xf32>
    %45 = tpu.reciprocal %44 {approx = true} : vector<4x8x1xf32> -> vector<4x8x1xf32>
    %46 = vector.broadcast %45 : vector<4x8x1xf32> to vector<4x8x256xf32>
    %47 = arith.mulf %42, %46 : vector<4x8x256xf32>
    %cst_19 = arith.constant 1.000000e+00 : f32
    %48 = vector.broadcast %cst_19 : f32 to vector<4x8x256xf32>
    %49 = arith.subf %48, %47 : vector<4x8x256xf32>
    %50 = arith.mulf %47, %49 : vector<4x8x256xf32>
    %cst_20 = arith.constant 0.000000e+00 : f32
    %51 = vector.broadcast %cst_20 : f32 to vector<4x8x256xf32>
    %52 = arith.maximumf %50, %51 : vector<4x8x256xf32>
    %53 = arith.index_cast %c1_i32 : i32 to index
    %c0_21 = arith.constant 0 : index
    %c0_22 = arith.constant 0 : index
    %c0_23 = arith.constant 0 : index
    %54 = vector.load %arg6[%53, %c0_21, %c0_22, %c0_23] : memref<3x4x8x256xf32, #tpu.memory_space<vmem>>, vector<1x4x8x256xf32>
    %55 = vector.shape_cast %54 : vector<1x4x8x256xf32> to vector<4x8x256xf32>
    %56 = math.sqrt %52 : vector<4x8x256xf32>
    %57 = arith.mulf %55, %56 : vector<4x8x256xf32>
    %58 = arith.addf %47, %57 : vector<4x8x256xf32>
    %59 = arith.truncf %58 : vector<4x8x256xf32> to vector<4x8x256xbf16>
    "tpu.trace_start"() <{level = 10 : i32, message = "cpi,cbi->cbp"}> : () -> ()
    %cst_24 = arith.constant dense<0.000000e+00> : vector<4x8x256xf32>
    %60 = tpu.matmul %59, %0, %cst_24 {dimension_numbers = #tpu.dot_dimension_numbers<[2], [2], [1], [1], [0, 0, 0, 1, 1, 1], [0], [0]>} : vector<4x8x256xbf16>, vector<4x256x256xbf16>, vector<4x8x256xf32> -> vector<4x8x256xf32>
    "tpu.trace_stop"() : () -> ()
    %c2_i32 = arith.constant 2 : i32
    %61 = vector.broadcast %5 : vector<1x1x256xf32> to vector<4x8x256xf32>
    %62 = arith.subf %60, %61 : vector<4x8x256xf32>
    %cst_25 = arith.constant dense<0xFF800000> : vector<4x8xf32>
    %63 = vector.multi_reduction <maximumf>, %62, %cst_25 [2] : vector<4x8x256xf32> to vector<4x8xf32>
    %64 = vector.shape_cast %63 : vector<4x8xf32> to vector<4x8x1xf32>
    %65 = vector.broadcast %64 : vector<4x8x1xf32> to vector<4x8x256xf32>
    %66 = arith.subf %60, %65 : vector<4x8x256xf32>
    %67 = math.exp %66 : vector<4x8x256xf32>
    %68 = vector.broadcast %1 : vector<1x1x256xf32> to vector<4x8x256xf32>
    %69 = arith.mulf %67, %68 : vector<4x8x256xf32>
    %cst_26 = arith.constant dense<0.000000e+00> : vector<4x8xf32>
    %70 = vector.multi_reduction <add>, %69, %cst_26 [2] : vector<4x8x256xf32> to vector<4x8xf32>
    %71 = vector.shape_cast %70 : vector<4x8xf32> to vector<4x8x1xf32>
    %72 = tpu.reciprocal %71 {approx = true} : vector<4x8x1xf32> -> vector<4x8x1xf32>
    %73 = vector.broadcast %72 : vector<4x8x1xf32> to vector<4x8x256xf32>
    %74 = arith.mulf %69, %73 : vector<4x8x256xf32>
    %cst_27 = arith.constant 1.000000e+00 : f32
    %75 = vector.broadcast %cst_27 : f32 to vector<4x8x256xf32>
    %76 = arith.subf %75, %74 : vector<4x8x256xf32>
    %77 = arith.mulf %74, %76 : vector<4x8x256xf32>
    %cst_28 = arith.constant 0.000000e+00 : f32
    %78 = vector.broadcast %cst_28 : f32 to vector<4x8x256xf32>
    %79 = arith.maximumf %77, %78 : vector<4x8x256xf32>
    %80 = arith.index_cast %c2_i32 : i32 to index
    %c0_29 = arith.constant 0 : index
    %c0_30 = arith.constant 0 : index
    %c0_31 = arith.constant 0 : index
    %81 = vector.load %arg6[%80, %c0_29, %c0_30, %c0_31] : memref<3x4x8x256xf32, #tpu.memory_space<vmem>>, vector<1x4x8x256xf32>
    %82 = vector.shape_cast %81 : vector<1x4x8x256xf32> to vector<4x8x256xf32>
    %83 = math.sqrt %79 : vector<4x8x256xf32>
    %84 = arith.mulf %82, %83 : vector<4x8x256xf32>
    %85 = arith.addf %74, %84 : vector<4x8x256xf32>
    %86 = arith.truncf %85 : vector<4x8x256xf32> to vector<4x8x256xbf16>
    "tpu.trace_start"() <{level = 10 : i32, message = "cpi,cbi->cbp"}> : () -> ()
    %cst_32 = arith.constant dense<0.000000e+00> : vector<4x8x256xf32>
    %87 = tpu.matmul %86, %0, %cst_32 {dimension_numbers = #tpu.dot_dimension_numbers<[2], [2], [1], [1], [0, 0, 0, 1, 1, 1], [0], [0]>} : vector<4x8x256xbf16>, vector<4x256x256xbf16>, vector<4x8x256xf32> -> vector<4x8x256xf32>
    "tpu.trace_stop"() : () -> ()
    %c3_i32 = arith.constant 3 : i32
    %88 = vector.extract_strided_slice %87 {offsets = [0, 0, 0], sizes = [4, 8, 128], strides = [1, 1, 1]} : vector<4x8x256xf32> to vector<4x8x128xf32>
    %89 = vector.extract_strided_slice %87 {offsets = [0, 0, 128], sizes = [4, 8, 128], strides = [1, 1, 1]} : vector<4x8x256xf32> to vector<4x8x128xf32>
    %90 = arith.maximumf %88, %89 : vector<4x8x128xf32>
    %c0_33 = arith.constant 0 : index
    %c0_34 = arith.constant 0 : index
    %c0_35 = arith.constant 0 : index
    %91 = vector.load %arg3[%c0_33, %c0_34, %c0_35] : memref<4x1x128xf32, #tpu.memory_space<vmem>>, vector<4x1x128xf32>
    %92 = vector.broadcast %91 : vector<4x1x128xf32> to vector<4x8x128xf32>
    %93 = arith.mulf %90, %92 : vector<4x8x128xf32>
    %cst_36 = arith.constant dense<0.000000e+00> : vector<8x128xf32>
    %94 = vector.multi_reduction <add>, %93, %cst_36 [0] : vector<4x8x128xf32> to vector<8x128xf32>
    %c0_37 = arith.constant 0 : index
    %c0_38 = arith.constant 0 : index
    %95 = vector.load %arg4[%c0_37, %c0_38] : memref<1x128xf32, #tpu.memory_space<vmem>>, vector<1x128xf32>
    %96 = vector.broadcast %95 : vector<1x128xf32> to vector<8x128xf32>
    %97 = arith.addf %94, %96 : vector<8x128xf32>
    %c0_39 = arith.constant 0 : index
    %c0_40 = arith.constant 0 : index
    %98 = vector.load %arg7[%c0_39, %c0_40] : memref<8x128xf32, #tpu.memory_space<vmem>>, vector<8x128xf32>
    tpu.vector_store %arg7[%c0_39, %c0_40], %97 {strides = array<i32>} : memref<8x128xf32, #tpu.memory_space<vmem>>, vector<8x128xf32>,
    return
  }
  func.func @transform_0(%arg0: i32) -> (i32, i32, i32) {
    %c0_i32 = arith.constant 0 : i32
    %c0_i32_0 = arith.constant 0 : i32
    %c0_i32_1 = arith.constant 0 : i32
    return %c0_i32, %arg0, %c0_i32_0 : i32, i32, i32
  }
  func.func @transform_1(%arg0: i32) -> (i32, i32, i32) {
    %c0_i32 = arith.constant 0 : i32
    %c0_i32_0 = arith.constant 0 : i32
    %c0_i32_1 = arith.constant 0 : i32
    %c0_i32_2 = arith.constant 0 : i32
    return %c0_i32, %c0_i32_0, %c0_i32_1 : i32, i32, i32
  }
  func.func @transform_2(%arg0: i32) -> (i32, i32, i32) {
    %c0_i32 = arith.constant 0 : i32
    %c0_i32_0 = arith.constant 0 : i32
    %c0_i32_1 = arith.constant 0 : i32
    %c0_i32_2 = arith.constant 0 : i32
    return %c0_i32, %c0_i32_0, %c0_i32_1 : i32, i32, i32
  }
  func.func @transform_3(%arg0: i32) -> (i32, i32) {
    %c0_i32 = arith.constant 0 : i32
    %c0_i32_0 = arith.constant 0 : i32
    %c0_i32_1 = arith.constant 0 : i32
    return %c0_i32, %c0_i32_0 : i32, i32
  }
  func.func @transform_4(%arg0: i32) -> (i32, i32, i32) {
    %c0_i32 = arith.constant 0 : i32
    %c0_i32_0 = arith.constant 0 : i32
    %c0_i32_1 = arith.constant 0 : i32
    %c0_i32_2 = arith.constant 0 : i32
    return %c0_i32, %c0_i32_0, %c0_i32_1 : i32, i32, i32
  }
  func.func @transform_5(%arg0: i32) -> (i32, i32, i32, i32) {
    %c0_i32 = arith.constant 0 : i32
    %c0_i32_0 = arith.constant 0 : i32
    %c0_i32_1 = arith.constant 0 : i32
    %c0_i32_2 = arith.constant 0 : i32
    return %c0_i32, %c0_i32_0, %arg0, %c0_i32_1 : i32, i32, i32, i32
  }
  func.func @transform_6(%arg0: i32) -> (i32, i32) {
    %c0_i32 = arith.constant 0 : i32
    %c0_i32_0 = arith.constant 0 : i32
    return %arg0, %c0_i32 : i32, i32
  }
}

</mosaic_0001>

<llo_original>
// kernel: tpu_custom_call.1
$region0: #{tpu_custom_call.1}
  #allocation0 [shape = 'u32[]', space=smem, size = 0x4, offset = 0x4, fixed_abs, tag = 'smem constant byte address 0x4 - core index']
  #allocation1 [shape = 'u32[144,128]{1,0:T(1,128)}', space=vmem, size = 0x12000, scoped, tag = 'internal scratch']
  %s0 = inlined_call_operand.hbm [shape: f32[4,8,256], index: 0, kind: input, shape index: {}]
  %s1 = inlined_call_operand.hbm [shape: bf16[4,256,256], index: 1, kind: input, shape index: {}]
  %s2 = inlined_call_operand.vmem [shape: f32[4,1,128], index: 2, kind: input, shape index: {}]
  %s3 = inlined_call_operand.vmem [shape: f32[1,128], index: 3, kind: input, shape index: {}]
  %s4 = inlined_call_operand.vmem [shape: f32[1,1,256], index: 4, kind: input, shape index: {}]
  %s5 = inlined_call_operand.hbm [shape: f32[3,4,8,256], index: 5, kind: input, shape index: {}]
  %s6 = inlined_call_operand.hbm [shape: f32[8,128], index: 6, kind: output, shape index: {}]
  %s7 = sld [smem:[#allocation0]]
  $region46: #{tpu_custom_call.1} parent=0
    _
  %s9 = ssub.s32 1, %s7
  %s10 = scalar_select 0, %s9, %s7
  $region1: #{tpu_custom_call.1} parent=0
    #allocation2 [shape = 'u8[32768]{0}', space=vmem, size = 0x8000, scoped, tag = 'input window, operand 0, single buffered']
    #allocation3 [shape = 's32[1]{0}', space=sflag, size = 0x4, scoped, tag = 'scoped memory for tpu_custom_call.1']
    #allocation4 [shape = 's32[1]{0}', space=sflag, size = 0x4, scoped, tag = 'scoped memory for tpu_custom_call.1']
    #allocation5 [shape = 'u8[524288]{0}', space=vmem, size = 0x80000, scoped, tag = 'input window, operand 1, single buffered']
    #allocation6 [shape = 's32[1]{0}', space=sflag, size = 0x4, scoped, tag = 'scoped memory for tpu_custom_call.1']
    #allocation7 [shape = 'u8[98304]{0}', space=vmem, size = 0x18000, scoped, tag = 'input window, operand 5, single buffered']
    #allocation8 [shape = 'u8[4096]{0}', space=vmem, size = 0x1000, scoped, tag = 'output window, operand 0, single buffered']
    %11 = vsyncpa [#allocation3], 0
    %12 = vsyncpa [#allocation6], 0
    %13 = vsyncpa [#allocation4], 0
    // Predicated region
    $region2: #{tpu_custom_call.1} parent=1 // pred_check
      _
    $region3: #{tpu_custom_call.1} parent=1 // pred_check_branch
      %15 = sbr.rel (0) target = $region5
    $region4: #{tpu_custom_call.1} parent=1 // pred_region
      %s17 = ssub.s32 1024, 1024
      %18 = vsyncadd [#allocation3], %s17
      %s19 = sshll.u32 [#allocation2], 4
      %s20 = int_to_ptr.vmem [resolvable:$true] %s19
      %25 = dma.hbm_to_vmem [thread:$0]  %s0, 1024, %s20, [#allocation3], 256, 256, 16
    $region5: #{tpu_custom_call.1} parent=1 // pred_fallthru
      _
    // Predicated region
    $region6: #{tpu_custom_call.1} parent=1 // pred_check
      _
    $region7: #{tpu_custom_call.1} parent=1 // pred_check_branch
      %27 = sbr.rel (0) target = $region9
    $region8: #{tpu_custom_call.1} parent=1 // pred_region
      %s29 = ssub.s32 16384, 16384
      %30 = vsyncadd [#allocation6], %s29
      %s31 = sshll.u32 [#allocation5], 4
      %s32 = int_to_ptr.vmem [resolvable:$true] %s31
      %37 = dma.hbm_to_vmem [thread:$0]  %s1, 16384, %s32, [#allocation6], 128, 128, 8
    $region9: #{tpu_custom_call.1} parent=1 // pred_fallthru
      _
    // Predicated region
    $region10: #{tpu_custom_call.1} parent=1 // pred_check
      _
    $region11: #{tpu_custom_call.1} parent=1 // pred_check_branch
      %39 = sbr.rel (0) target = $region13
    $region12: #{tpu_custom_call.1} parent=1 // pred_region
      _
    $region13: #{tpu_custom_call.1} parent=1 // pred_fallthru
      _
    // Predicated region
    $region14: #{tpu_custom_call.1} parent=1 // pred_check
      _
    $region15: #{tpu_custom_call.1} parent=1 // pred_check_branch
      %41 = sbr.rel (0) target = $region17
    $region16: #{tpu_custom_call.1} parent=1 // pred_region
      _
    $region17: #{tpu_custom_call.1} parent=1 // pred_fallthru
      _
    // Predicated region
    $region18: #{tpu_custom_call.1} parent=1 // pred_check
      _
    $region19: #{tpu_custom_call.1} parent=1 // pred_check_branch
      %43 = sbr.rel (0) target = $region21
    $region20: #{tpu_custom_call.1} parent=1 // pred_region
      _
    $region21: #{tpu_custom_call.1} parent=1 // pred_fallthru
      _
    // Predicated region
    $region22: #{tpu_custom_call.1} parent=1 // pred_check
      _
    $region23: #{tpu_custom_call.1} parent=1 // pred_check_branch
      %45 = sbr.rel (0) target = $region25
    $region24: #{tpu_custom_call.1} parent=1 // pred_region
      %s47 = ssub.s32 3072, 3072
      %48 = vsyncadd [#allocation6], %s47
      %s49 = sshll.u32 [#allocation7], 4
      %s50 = int_to_ptr.vmem [resolvable:$true] %s49
      %55 = dma.hbm_to_vmem [thread:$0]  %s5, 3072, %s50, [#allocation6], 256, 256, 16
    $region25: #{tpu_custom_call.1} parent=1 // pred_fallthru
      _
    // Predicated region
    $region26: #{tpu_custom_call.1} parent=1 // pred_check
      _
    $region27: #{tpu_custom_call.1} parent=1 // pred_check_branch
      %57 = sbr.rel (0) target = $region29
    $region28: #{tpu_custom_call.1} parent=1 // pred_region
      %58 = dma.done [#allocation3], 1024
    $region29: #{tpu_custom_call.1} parent=1 // pred_fallthru
      _
    // Predicated region
    $region30: #{tpu_custom_call.1} parent=1 // pred_check
      _
    $region31: #{tpu_custom_call.1} parent=1 // pred_check_branch
      %60 = sbr.rel (0) target = $region33
    $region32: #{tpu_custom_call.1} parent=1 // pred_region
      %61 = dma.done [#allocation6], 16384
    $region33: #{tpu_custom_call.1} parent=1 // pred_fallthru
      _
    // Predicated region
    $region34: #{tpu_custom_call.1} parent=1 // pred_check
      _
    $region35: #{tpu_custom_call.1} parent=1 // pred_check_branch
      %63 = sbr.rel (0) target = $region37
    $region36: #{tpu_custom_call.1} parent=1 // pred_region
      %64 = dma.done [#allocation6], 3072
    $region37: #{tpu_custom_call.1} parent=1 // pred_fallthru
      _
    %v65 = vld [vmem:[#allocation5] sm:$0xff]
    %v66 = vld [vmem:[#allocation5 + $0x8] sm:$0xff]
    %v67 = vld [vmem:[#allocation5 + $0x10] sm:$0xff]
    %v68 = vld [vmem:[#allocation5 + $0x18] sm:$0xff]
    %v69 = vld [vmem:[#allocation5 + $0x20] sm:$0xff]
    %v70 = vld [vmem:[#allocation5 + $0x28] sm:$0xff]
    %v71 = vld [vmem:[#allocation5 + $0x30] sm:$0xff]
    %v72 = vld [vmem:[#allocation5 + $0x38] sm:$0xff]
    %v73 = vld [vmem:[#allocation5 + $0x40] sm:$0xff]
    %v74 = vld [vmem:[#allocation5 + $0x48] sm:$0xff]
    %v75 = vld [vmem:[#allocation5 + $0x50] sm:$0xff]
    %v76 = vld [vmem:[#allocation5 + $0x58] sm:$0xff]
    %v77 = vld [vmem:[#allocation5 + $0x60] sm:$0xff]
    %v78 = vld [vmem:[#allocation5 + $0x68] sm:$0xff]
    %v79 = vld [vmem:[#allocation5 + $0x70] sm:$0xff]
    %v80 = vld [vmem:[#allocation5 + $0x78] sm:$0xff]
    %v81 = vld [vmem:[#allocation5 + $0x80] sm:$0xff]
    %v82 = vld [vmem:[#allocation5 + $0x88] sm:$0xff]
    %v83 = vld [vmem:[#allocation5 + $0x90] sm:$0xff]
    %v84 = vld [vmem:[#allocation5 + $0x98] sm:$0xff]
    %v85 = vld [vmem:[#allocation5 + $0xa0] sm:$0xff]
    %v86 = vld [vmem:[#allocation5 + $0xa8] sm:$0xff]
    %v87 = vld [vmem:[#allocation5 + $0xb0] sm:$0xff]
    %v88 = vld [vmem:[#allocation5 + $0xb8] sm:$0xff]
    %v89 = vld [vmem:[#allocation5 + $0xc0] sm:$0xff]
    %v90 = vld [vmem:[#allocation5 + $0xc8] sm:$0xff]
    %v91 = vld [vmem:[#allocation5 + $0xd0] sm:$0xff]
    %v92 = vld [vmem:[#allocation5 + $0xd8] sm:$0xff]
    %v93 = vld [vmem:[#allocation5 + $0xe0] sm:$0xff]
    %v94 = vld [vmem:[#allocation5 + $0xe8] sm:$0xff]
    %v95 = vld [vmem:[#allocation5 + $0xf0] sm:$0xff]
    %v96 = vld [vmem:[#allocation5 + $0xf8] sm:$0xff]
    %v97 = vld [vmem:[#allocation5 + $0x100] sm:$0xff]
    %v98 = vld [vmem:[#allocation5 + $0x108] sm:$0xff]
    %v99 = vld [vmem:[#allocation5 + $0x110] sm:$0xff]
    %v100 = vld [vmem:[#allocation5 + $0x118] sm:$0xff]
    %v101 = vld [vmem:[#allocation5 + $0x120] sm:$0xff]
    %v102 = vld [vmem:[#allocation5 + $0x128] sm:$0xff]
    %v103 = vld [vmem:[#allocation5 + $0x130] sm:$0xff]
    %v104 = vld [vmem:[#allocation5 + $0x138] sm:$0xff]
    %v105 = vld [vmem:[#allocation5 + $0x140] sm:$0xff]
    %v106 = vld [vmem:[#allocation5 + $0x148] sm:$0xff]
    %v107 = vld [vmem:[#allocation5 + $0x150] sm:$0xff]
    %v108 = vld [vmem:[#allocation5 + $0x158] sm:$0xff]
    %v109 = vld [vmem:[#allocation5 + $0x160] sm:$0xff]
    %v110 = vld [vmem:[#allocation5 + $0x168] sm:$0xff]
    %v111 = vld [vmem:[#allocation5 + $0x170] sm:$0xff]
    %v112 = vld [vmem:[#allocation5 + $0x178] sm:$0xff]
    %v113 = vld [vmem:[#allocation5 + $0x180] sm:$0xff]
    %v114 = vld [vmem:[#allocation5 + $0x188] sm:$0xff]
    %v115 = vld [vmem:[#allocation5 + $0x190] sm:$0xff]
    %v116 = vld [vmem:[#allocation5 + $0x198] sm:$0xff]
    %v117 = vld [vmem:[#allocation5 + $0x1a0] sm:$0xff]
    %v118 = vld [vmem:[#allocation5 + $0x1a8] sm:$0xff]
    %v119 = vld [vmem:[#allocation5 + $0x1b0] sm:$0xff]
    %v120 = vld [vmem:[#allocation5 + $0x1b8] sm:$0xff]
    %v121 = vld [vmem:[#allocation5 + $0x1c0] sm:$0xff]
    %v122 = vld [vmem:[#allocation5 + $0x1c8] sm:$0xff]
    %v123 = vld [vmem:[#allocation5 + $0x1d0] sm:$0xff]
    %v124 = vld [vmem:[#allocation5 + $0x1d8] sm:$0xff]
    %v125 = vld [vmem:[#allocation5 + $0x1e0] sm:$0xff]
    %v126 = vld [vmem:[#allocation5 + $0x1e8] sm:$0xff]
    %v127 = vld [vmem:[#allocation5 + $0x1f0] sm:$0xff]
    %v128 = vld [vmem:[#allocation5 + $0x1f8] sm:$0xff]
    %v129 = vld [vmem:[#allocation5 + $0x200] sm:$0xff]
    %v130 = vld [vmem:[#allocation5 + $0x208] sm:$0xff]
    %v131 = vld [vmem:[#allocation5 + $0x210] sm:$0xff]
    %v132 = vld [vmem:[#allocation5 + $0x218] sm:$0xff]
    %v133 = vld [vmem:[#allocation5 + $0x220] sm:$0xff]
    %v134 = vld [vmem:[#allocation5 + $0x228] sm:$0xff]
    %v135 = vld [vmem:[#allocation5 + $0x230] sm:$0xff]
    %v136 = vld [vmem:[#allocation5 + $0x238] sm:$0xff]
    %v137 = vld [vmem:[#allocation5 + $0x240] sm:$0xff]
    %v138 = vld [vmem:[#allocation5 + $0x248] sm:$0xff]
    %v139 = vld [vmem:[#allocation5 + $0x250] sm:$0xff]
    %v140 = vld [vmem:[#allocation5 + $0x258] sm:$0xff]
    %v141 = vld [vmem:[#allocation5 + $0x260] sm:$0xff]
    %v142 = vld [vmem:[#allocation5 + $0x268] sm:$0xff]
    %v143 = vld [vmem:[#allocation5 + $0x270] sm:$0xff]
    %v144 = vld [vmem:[#allocation5 + $0x278] sm:$0xff]
    %v145 = vld [vmem:[#allocation5 + $0x280] sm:$0xff]
    %v146 = vld [vmem:[#allocation5 + $0x288] sm:$0xff]
    %v147 = vld [vmem:[#allocation5 + $0x290] sm:$0xff]
    %v148 = vld [vmem:[#allocation5 + $0x298] sm:$0xff]
    %v149 = vld [vmem:[#allocation5 + $0x2a0] sm:$0xff]
    %v150 = vld [vmem:[#allocation5 + $0x2a8] sm:$0xff]
    %v151 = vld [vmem:[#allocation5 + $0x2b0] sm:$0xff]
    %v152 = vld [vmem:[#allocation5 + $0x2b8] sm:$0xff]
    %v153 = vld [vmem:[#allocation5 + $0x2c0] sm:$0xff]
    %v154 = vld [vmem:[#allocation5 + $0x2c8] sm:$0xff]
    %v155 = vld [vmem:[#allocation5 + $0x2d0] sm:$0xff]
    %v156 = vld [vmem:[#allocation5 + $0x2d8] sm:$0xff]
    %v157 = vld [vmem:[#allocation5 + $0x2e0] sm:$0xff]
    %v158 = vld [vmem:[#allocation5 + $0x2e8] sm:$0xff]
    %v159 = vld [vmem:[#allocation5 + $0x2f0] sm:$0xff]
    %v160 = vld [vmem:[#allocation5 + $0x2f8] sm:$0xff]
    %v161 = vld [vmem:[#allocation5 + $0x300] sm:$0xff]
    %v162 = vld [vmem:[#allocation5 + $0x308] sm:$0xff]
    %v163 = vld [vmem:[#allocation5 + $0x310] sm:$0xff]
    %v164 = vld [vmem:[#allocation5 + $0x318] sm:$0xff]
    %v165 = vld [vmem:[#allocation5 + $0x320] sm:$0xff]
    %v166 = vld [vmem:[#allocation5 + $0x328] sm:$0xff]
    %v167 = vld [vmem:[#allocation5 + $0x330] sm:$0xff]
    %v168 = vld [vmem:[#allocation5 + $0x338] sm:$0xff]
    %v169 = vld [vmem:[#allocation5 + $0x340] sm:$0xff]
    %v170 = vld [vmem:[#allocation5 + $0x348] sm:$0xff]
    %v171 = vld [vmem:[#allocation5 + $0x350] sm:$0xff]
    %v172 = vld [vmem:[#allocation5 + $0x358] sm:$0xff]
    %v173 = vld [vmem:[#allocation5 + $0x360] sm:$0xff]
    %v174 = vld [vmem:[#allocation5 + $0x368] sm:$0xff]
    %v175 = vld [vmem:[#allocation5 + $0x370] sm:$0xff]
    %v176 = vld [vmem:[#allocation5 + $0x378] sm:$0xff]
    %v177 = vld [vmem:[#allocation5 + $0x380] sm:$0xff]
    %v178 = vld [vmem:[#allocation5 + $0x388] sm:$0xff]
    %v179 = vld [vmem:[#allocation5 + $0x390] sm:$0xff]
    %v180 = vld [vmem:[#allocation5 + $0x398] sm:$0xff]
    %v181 = vld [vmem:[#allocation5 + $0x3a0] sm:$0xff]
    %v182 = vld [vmem:[#allocation5 + $0x3a8] sm:$0xff]
    %v183 = vld [vmem:[#allocation5 + $0x3b0] sm:$0xff]
    %v184 = vld [vmem:[#allocation5 + $0x3b8] sm:$0xff]
    %v185 = vld [vmem:[#allocation5 + $0x3c0] sm:$0xff]
    %v186 = vld [vmem:[#allocation5 + $0x3c8] sm:$0xff]
    %v187 = vld [vmem:[#allocation5 + $0x3d0] sm:$0xff]
    %v188 = vld [vmem:[#allocation5 + $0x3d8] sm:$0xff]
    %v189 = vld [vmem:[#allocation5 + $0x3e0] sm:$0xff]
    %v190 = vld [vmem:[#allocation5 + $0x3e8] sm:$0xff]
    %v191 = vld [vmem:[#allocation5 + $0x3f0] sm:$0xff]
    %v192 = vld [vmem:[#allocation5 + $0x3f8] sm:$0xff]
    %v193 = vld [vmem:[%s4] sm:$0x3]
    %v194 = vsub.f32 1.0, %v193
    %v195 = vmul.f32 %v194, 1e+30
    %v196 = vld [vmem:[#allocation2] sm:$0xff]
    %v197 = vld [vmem:[#allocation2 + $0x8] sm:$0xff]
    %v198 = vld [vmem:[#allocation2 + $0x10] sm:$0xff]
    %v199 = vld [vmem:[#allocation2 + $0x18] sm:$0xff]
    %v200 = vld [vmem:[#allocation2 + $0x20] sm:$0xff]
    %v201 = vld [vmem:[#allocation2 + $0x28] sm:$0xff]
    %v202 = vld [vmem:[#allocation2 + $0x30] sm:$0xff]
    %v203 = vld [vmem:[#allocation2 + $0x38] sm:$0xff]
    %v205 = vlaneseq
    %v206 = vshrl.u32 %v205, 7
    %v207 = vsub.s32 0, %v206
    %v208 = vrot.slane %v195, %v207
    %v209 = vlaneseq
    %v210 = vshrl.u32 %v209, 7
    %v211 = vsub.s32 1, %v210
    %v212 = vrot.slane %v195, %v211
    %v215 = vsub.f32 %v196, %v208
    %v216 = vsub.f32 %v197, %v212
    %v217 = vsub.f32 %v198, %v208
    %v218 = vsub.f32 %v199, %v212
    %v219 = vsub.f32 %v200, %v208
    %v220 = vsub.f32 %v201, %v212
    %v221 = vsub.f32 %v202, %v208
    %v222 = vsub.f32 %v203, %v212
    %v223 = vmax.f32 %v215, %v216
    %224 = vmax.xlane.f32.xlu0 %v223
    %v225 = vpop.xlane.xlu0 %224
    %v226 = vmax.f32 %v217, %v218
    %227 = vmax.xlane.f32.xlu0 %v226
    %v228 = vpop.xlane.xlu0 %227
    %v229 = vmax.f32 %v219, %v220
    %230 = vmax.xlane.f32.xlu0 %v229
    %v231 = vpop.xlane.xlu0 %230
    %v232 = vmax.f32 %v221, %v222
    %233 = vmax.xlane.f32.xlu0 %v232
    %v234 = vpop.xlane.xlu0 %233
    %v235 = vsub.f32 %v196, %v225
    %v236 = vsub.f32 %v197, %v225
    %v237 = vsub.f32 %v198, %v228
    %v238 = vsub.f32 %v199, %v228
    %v239 = vsub.f32 %v200, %v231
    %v240 = vsub.f32 %v201, %v231
    %v241 = vsub.f32 %v202, %v234
    %v242 = vsub.f32 %v203, %v234
    %v243 = vmul.f32 %v235, 1.442695
    %v244 = vpow.pop %v243
    %v245 = vmul.f32 %v236, 1.442695
    %v246 = vpow.pop %v245
    %v247 = vmul.f32 %v237, 1.442695
    %v248 = vpow.pop %v247
    %v249 = vmul.f32 %v238, 1.442695
    %v250 = vpow.pop %v249
    %v251 = vmul.f32 %v239, 1.442695
    %v252 = vpow.pop %v251
    %v253 = vmul.f32 %v240, 1.442695
    %v254 = vpow.pop %v253
    %v255 = vmul.f32 %v241, 1.442695
    %v256 = vpow.pop %v255
    %v257 = vmul.f32 %v242, 1.442695
    %v258 = vpow.pop %v257
    %v260 = vlaneseq
    %v261 = vshrl.u32 %v260, 7
    %v262 = vsub.s32 0, %v261
    %v263 = vrot.slane %v193, %v262
    %v264 = vlaneseq
    %v265 = vshrl.u32 %v264, 7
    %v266 = vsub.s32 1, %v265
    %v267 = vrot.slane %v193, %v266
    %v270 = vmul.f32 %v244, %v263
    %v271 = vmul.f32 %v246, %v267
    %v272 = vmul.f32 %v248, %v263
    %v273 = vmul.f32 %v250, %v267
    %v274 = vmul.f32 %v252, %v263
    %v275 = vmul.f32 %v254, %v267
    %v276 = vmul.f32 %v256, %v263
    %v277 = vmul.f32 %v258, %v267
    %v278 = vadd.f32 %v270, %v271
    %279 = vadd.xlane.f32.xlu0 %v278
    %v280 = vpop.xlane.xlu0 %279
    %v281 = vadd.f32 %v272, %v273
    %282 = vadd.xlane.f32.xlu0 %v281
    %v283 = vpop.xlane.xlu0 %282
    %v284 = vadd.f32 %v274, %v275
    %285 = vadd.xlane.f32.xlu0 %v284
    %v286 = vpop.xlane.xlu0 %285
    %v287 = vadd.f32 %v276, %v277
    %288 = vadd.xlane.f32.xlu0 %v287
    %v289 = vpop.xlane.xlu0 %288
    %v290 = vrcp.pop %v280
    %v291 = vrcp.pop %v283
    %v292 = vrcp.pop %v286
    %v293 = vrcp.pop %v289
    %v294 = vmul.f32 %v270, %v290
    %v295 = vmul.f32 %v271, %v290
    %v296 = vmul.f32 %v272, %v291
    %v297 = vmul.f32 %v273, %v291
    %v298 = vmul.f32 %v274, %v292
    %v299 = vmul.f32 %v275, %v292
    %v300 = vmul.f32 %v276, %v293
    %v301 = vmul.f32 %v277, %v293
    %v302 = vsub.f32 1.0, %v294
    %v303 = vsub.f32 1.0, %v295
    %v304 = vsub.f32 1.0, %v296
    %v305 = vsub.f32 1.0, %v297
    %v306 = vsub.f32 1.0, %v298
    %v307 = vsub.f32 1.0, %v299
    %v308 = vsub.f32 1.0, %v300
    %v309 = vsub.f32 1.0, %v301
    %v310 = vmul.f32 %v294, %v302
    %v311 = vmul.f32 %v295, %v303
    %v312 = vmul.f32 %v296, %v304
    %v313 = vmul.f32 %v297, %v305
    %v314 = vmul.f32 %v298, %v306
    %v315 = vmul.f32 %v299, %v307
    %v316 = vmul.f32 %v300, %v308
    %v317 = vmul.f32 %v301, %v309
    %v318 = vmax.f32 %v310, 0.0
    %v319 = vmax.f32 %v311, 0.0
    %v320 = vmax.f32 %v312, 0.0
    %v321 = vmax.f32 %v313, 0.0
    %v322 = vmax.f32 %v314, 0.0
    %v323 = vmax.f32 %v315, 0.0
    %v324 = vmax.f32 %v316, 0.0
    %v325 = vmax.f32 %v317, 0.0
    %v326 = vld [vmem:[#allocation7] sm:$0xff]
    %v327 = vld [vmem:[#allocation7 + $0x8] sm:$0xff]
    %v328 = vld [vmem:[#allocation7 + $0x10] sm:$0xff]
    %v329 = vld [vmem:[#allocation7 + $0x18] sm:$0xff]
    %v330 = vld [vmem:[#allocation7 + $0x20] sm:$0xff]
    %v331 = vld [vmem:[#allocation7 + $0x28] sm:$0xff]
    %v332 = vld [vmem:[#allocation7 + $0x30] sm:$0xff]
    %v333 = vld [vmem:[#allocation7 + $0x38] sm:$0xff]
    %v334 = vrsqrt.pop %v318
    %v335 = vmul.f32 %v318, %v334
    %vm336 = vcmp.eq.f32.partialorder %v318, inf
    %v337 = vsel %vm336, %v318, %v335
    %vm338 = vcmp.eq.f32.partialorder %v318, 0.0
    %v339 = vand.u32 %v318, 2147483648
    %v340 = vsel %vm338, %v339, %v337
    %v341 = vrsqrt.pop %v319
    %v342 = vmul.f32 %v319, %v341
    %vm343 = vcmp.eq.f32.partialorder %v319, inf
    %v344 = vsel %vm343, %v319, %v342
    %vm345 = vcmp.eq.f32.partialorder %v319, 0.0
    %v346 = vand.u32 %v319, 2147483648
    %v347 = vsel %vm345, %v346, %v344
    %v348 = vrsqrt.pop %v320
    %v349 = vmul.f32 %v320, %v348
    %vm350 = vcmp.eq.f32.partialorder %v320, inf
    %v351 = vsel %vm350, %v320, %v349
    %vm352 = vcmp.eq.f32.partialorder %v320, 0.0
    %v353 = vand.u32 %v320, 2147483648
    %v354 = vsel %vm352, %v353, %v351
    %v355 = vrsqrt.pop %v321
    %v356 = vmul.f32 %v321, %v355
    %vm357 = vcmp.eq.f32.partialorder %v321, inf
    %v358 = vsel %vm357, %v321, %v356
    %vm359 = vcmp.eq.f32.partialorder %v321, 0.0
    %v360 = vand.u32 %v321, 2147483648
    %v361 = vsel %vm359, %v360, %v358
    %v362 = vrsqrt.pop %v322
    %v363 = vmul.f32 %v322, %v362
    %vm364 = vcmp.eq.f32.partialorder %v322, inf
    %v365 = vsel %vm364, %v322, %v363
    %vm366 = vcmp.eq.f32.partialorder %v322, 0.0
    %v367 = vand.u32 %v322, 2147483648
    %v368 = vsel %vm366, %v367, %v365
    %v369 = vrsqrt.pop %v323
    %v370 = vmul.f32 %v323, %v369
    %vm371 = vcmp.eq.f32.partialorder %v323, inf
    %v372 = vsel %vm371, %v323, %v370
    %vm373 = vcmp.eq.f32.partialorder %v323, 0.0
    %v374 = vand.u32 %v323, 2147483648
    %v375 = vsel %vm373, %v374, %v372
    %v376 = vrsqrt.pop %v324
    %v377 = vmul.f32 %v324, %v376
    %vm378 = vcmp.eq.f32.partialorder %v324, inf
    %v379 = vsel %vm378, %v324, %v377
    %vm380 = vcmp.eq.f32.partialorder %v324, 0.0
    %v381 = vand.u32 %v324, 2147483648
    %v382 = vsel %vm380, %v381, %v379
    %v383 = vrsqrt.pop %v325
    %v384 = vmul.f32 %v325, %v383
    %vm385 = vcmp.eq.f32.partialorder %v325, inf
    %v386 = vsel %vm385, %v325, %v384
    %vm387 = vcmp.eq.f32.partialorder %v325, 0.0
    %v388 = vand.u32 %v325, 2147483648
    %v389 = vsel %vm387, %v388, %v386
    %v390 = vmul.f32 %v326, %v340
    %v391 = vmul.f32 %v327, %v347
    %v392 = vmul.f32 %v328, %v354
    %v393 = vmul.f32 %v329, %v361
    %v394 = vmul.f32 %v330, %v368
    %v395 = vmul.f32 %v331, %v375
    %v396 = vmul.f32 %v332, %v382
    %v397 = vmul.f32 %v333, %v389
    %v398 = vadd.f32 %v294, %v390
    %v399 = vadd.f32 %v295, %v391
    %v400 = vadd.f32 %v296, %v392
    %v401 = vadd.f32 %v297, %v393
    %v402 = vadd.f32 %v298, %v394
    %v403 = vadd.f32 %v299, %v395
    %v404 = vadd.f32 %v300, %v396
    %v405 = vadd.f32 %v301, %v397
    %v406 = vpack.c.bf16 %v398, %v398
    %v407 = vpack.c.bf16 %v399, %v399
    %v408 = vpack.c.bf16 %v400, %v400
    %v409 = vpack.c.bf16 %v401, %v401
    %v410 = vpack.c.bf16 %v402, %v402
    %v411 = vpack.c.bf16 %v403, %v403
    %v412 = vpack.c.bf16 %v404, %v404
    %v413 = vpack.c.bf16 %v405, %v405
    %v446 = vunpack.c.l.b16 %v65
    %v447 = vunpack.c.h.b16 %v65
    %v448 = vunpack.c.l.b16 %v66
    %v449 = vunpack.c.h.b16 %v66
    %v450 = vunpack.c.l.b16 %v67
    %v451 = vunpack.c.h.b16 %v67
    %v452 = vunpack.c.l.b16 %v68
    %v453 = vunpack.c.h.b16 %v68
    %v454 = vunpack.c.l.b16 %v69
    %v455 = vunpack.c.h.b16 %v69
    %v456 = vunpack.c.l.b16 %v70
    %v457 = vunpack.c.h.b16 %v70
    %v458 = vunpack.c.l.b16 %v71
    %v459 = vunpack.c.h.b16 %v71
    %v460 = vunpack.c.l.b16 %v72
    %v461 = vunpack.c.h.b16 %v72
    %v462 = vunpack.c.l.b16 %v73
    %v463 = vunpack.c.h.b16 %v73
    %v464 = vunpack.c.l.b16 %v74
    %v465 = vunpack.c.h.b16 %v74
    %v466 = vunpack.c.l.b16 %v75
    %v467 = vunpack.c.h.b16 %v75
    %v468 = vunpack.c.l.b16 %v76
    %v469 = vunpack.c.h.b16 %v76
    %v470 = vunpack.c.l.b16 %v77
    %v471 = vunpack.c.h.b16 %v77
    %v472 = vunpack.c.l.b16 %v78
    %v473 = vunpack.c.h.b16 %v78
    %v474 = vunpack.c.l.b16 %v79
    %v475 = vunpack.c.h.b16 %v79
    %v476 = vunpack.c.l.b16 %v80
    %v477 = vunpack.c.h.b16 %v80
    %v478 = vunpack.c.l.b16 %v81
    %v479 = vunpack.c.h.b16 %v81
    %v480 = vunpack.c.l.b16 %v82
    %v481 = vunpack.c.h.b16 %v82
    %v482 = vunpack.c.l.b16 %v83
    %v483 = vunpack.c.h.b16 %v83
    %v484 = vunpack.c.l.b16 %v84
    %v485 = vunpack.c.h.b16 %v84
    %v486 = vunpack.c.l.b16 %v85
    %v487 = vunpack.c.h.b16 %v85
    %v488 = vunpack.c.l.b16 %v86
    %v489 = vunpack.c.h.b16 %v86
    %v490 = vunpack.c.l.b16 %v87
    %v491 = vunpack.c.h.b16 %v87
    %v492 = vunpack.c.l.b16 %v88
    %v493 = vunpack.c.h.b16 %v88
    %v494 = vunpack.c.l.b16 %v89
    %v495 = vunpack.c.h.b16 %v89
    %v496 = vunpack.c.l.b16 %v90
    %v497 = vunpack.c.h.b16 %v90
    %v498 = vunpack.c.l.b16 %v91
    %v499 = vunpack.c.h.b16 %v91
    %v500 = vunpack.c.l.b16 %v92
    %v501 = vunpack.c.h.b16 %v92
    %v502 = vunpack.c.l.b16 %v93
    %v503 = vunpack.c.h.b16 %v93
    %v504 = vunpack.c.l.b16 %v94
    %v505 = vunpack.c.h.b16 %v94
    %v506 = vunpack.c.l.b16 %v95
    %v507 = vunpack.c.h.b16 %v95
    %v508 = vunpack.c.l.b16 %v96
    %v509 = vunpack.c.h.b16 %v96
    %v510 = vpack.c.b16 %v448, %v446
    %v511 = vpack.c.b16 %v449, %v447
    %v512 = vpack.c.b16 %v452, %v450
    %v513 = vpack.c.b16 %v453, %v451
    %v514 = vpack.c.b16 %v456, %v454
    %v515 = vpack.c.b16 %v457, %v455
    %v516 = vpack.c.b16 %v460, %v458
    %v517 = vpack.c.b16 %v461, %v459
    %v518 = vpack.c.b16 %v464, %v462
    %v519 = vpack.c.b16 %v465, %v463
    %v520 = vpack.c.b16 %v468, %v466
    %v521 = vpack.c.b16 %v469, %v467
    %v522 = vpack.c.b16 %v472, %v470
    %v523 = vpack.c.b16 %v473, %v471
    %v524 = vpack.c.b16 %v476, %v474
    %v525 = vpack.c.b16 %v477, %v475
    %v526 = vpack.c.b16 %v480, %v478
    %v527 = vpack.c.b16 %v481, %v479
    %v528 = vpack.c.b16 %v484, %v482
    %v529 = vpack.c.b16 %v485, %v483
    %v530 = vpack.c.b16 %v488, %v486
    %v531 = vpack.c.b16 %v489, %v487
    %v532 = vpack.c.b16 %v492, %v490
    %v533 = vpack.c.b16 %v493, %v491
    %v534 = vpack.c.b16 %v496, %v494
    %v535 = vpack.c.b16 %v497, %v495
    %v536 = vpack.c.b16 %v500, %v498
    %v537 = vpack.c.b16 %v501, %v499
    %v538 = vpack.c.b16 %v504, %v502
    %v539 = vpack.c.b16 %v505, %v503
    %v540 = vpack.c.b16 %v508, %v506
    %v541 = vpack.c.b16 %v509, %v507
    %574 = vmatprep.subr.bf16.mxu0 %v511
    %575 = vmatpush1.bf16.xpose.msra.mxu0 %v510
    %576 = vmatprep.subr.bf16.mxu0 %v513
    %577 = vmatpush1.bf16.xpose.msra.mxu0 %v512
    %578 = vmatprep.subr.bf16.mxu0 %v515
    %579 = vmatpush1.bf16.xpose.msra.mxu0 %v514
    %580 = vmatprep.subr.bf16.mxu0 %v517
    %581 = vmatpush1.bf16.xpose.msra.mxu0 %v516
    %582 = vmatprep.subr.bf16.mxu0 %v519
    %583 = vmatpush1.bf16.xpose.msra.mxu0 %v518
    %584 = vmatprep.subr.bf16.mxu0 %v521
    %585 = vmatpush1.bf16.xpose.msra.mxu0 %v520
    %586 = vmatprep.subr.bf16.mxu0 %v523
    %587 = vmatpush1.bf16.xpose.msra.mxu0 %v522
    %588 = vmatprep.subr.bf16.mxu0 %v525
    %589 = vmatpush1.bf16.xpose.msra.mxu0 %v524
    %590 = vmatprep.subr.bf16.mxu0 %v527
    %591 = vmatpush1.bf16.xpose.msra.mxu0 %v526
    %592 = vmatprep.subr.bf16.mxu0 %v529
    %593 = vmatpush1.bf16.xpose.msra.mxu0 %v528
    %594 = vmatprep.subr.bf16.mxu0 %v531
    %595 = vmatpush1.bf16.xpose.msra.mxu0 %v530
    %596 = vmatprep.subr.bf16.mxu0 %v533
    %597 = vmatpush1.bf16.xpose.msra.mxu0 %v532
    %598 = vmatprep.subr.bf16.mxu0 %v535
    %599 = vmatpush1.bf16.xpose.msra.mxu0 %v534
    %600 = vmatprep.subr.bf16.mxu0 %v537
    %601 = vmatpush1.bf16.xpose.msra.mxu0 %v536
    %602 = vmatprep.subr.bf16.mxu0 %v539
    %603 = vmatpush1.bf16.xpose.msra.mxu0 %v538
    %604 = vmatprep.subr.bf16.mxu0 %v541
    %605 = vmatpush1.bf16.xpose.msra.mxu0 %v540
    %606 = vmatprep.mubr.bf16.mxu0 %v407
    %607 = vmatmul.mubr.bf16.gmra.mrb[0].mxu0 %v406
    %v608 = vpop.f32.mrb[0].mxu0
    %v609 = vadd.f32 0.0, %v608
    %v610 = vpop.f32.mrb[0].mxu0
    %v611 = vadd.f32 0.0, %v610
    %v612 = vpop.f32.mrb[0].mxu0
    %v613 = vpop.f32.mrb[0].mxu0
    %614 = vdwg.mxu0
    %v647 = vunpack.c.l.b16 %v97
    %v648 = vunpack.c.h.b16 %v97
    %v649 = vunpack.c.l.b16 %v98
    %v650 = vunpack.c.h.b16 %v98
    %v651 = vunpack.c.l.b16 %v99
    %v652 = vunpack.c.h.b16 %v99
    %v653 = vunpack.c.l.b16 %v100
    %v654 = vunpack.c.h.b16 %v100
    %v655 = vunpack.c.l.b16 %v101
    %v656 = vunpack.c.h.b16 %v101
    %v657 = vunpack.c.l.b16 %v102
    %v658 = vunpack.c.h.b16 %v102
    %v659 = vunpack.c.l.b16 %v103
    %v660 = vunpack.c.h.b16 %v103
    %v661 = vunpack.c.l.b16 %v104
    %v662 = vunpack.c.h.b16 %v104
    %v663 = vunpack.c.l.b16 %v105
    %v664 = vunpack.c.h.b16 %v105
    %v665 = vunpack.c.l.b16 %v106
    %v666 = vunpack.c.h.b16 %v106
    %v667 = vunpack.c.l.b16 %v107
    %v668 = vunpack.c.h.b16 %v107
    %v669 = vunpack.c.l.b16 %v108
    %v670 = vunpack.c.h.b16 %v108
    %v671 = vunpack.c.l.b16 %v109
    %v672 = vunpack.c.h.b16 %v109
    %v673 = vunpack.c.l.b16 %v110
    %v674 = vunpack.c.h.b16 %v110
    %v675 = vunpack.c.l.b16 %v111
    %v676 = vunpack.c.h.b16 %v111
    %v677 = vunpack.c.l.b16 %v112
    %v678 = vunpack.c.h.b16 %v112
    %v679 = vunpack.c.l.b16 %v113
    %v680 = vunpack.c.h.b16 %v113
    %v681 = vunpack.c.l.b16 %v114
    %v682 = vunpack.c.h.b16 %v114
    %v683 = vunpack.c.l.b16 %v115
    %v684 = vunpack.c.h.b16 %v115
    %v685 = vunpack.c.l.b16 %v116
    %v686 = vunpack.c.h.b16 %v116
    %v687 = vunpack.c.l.b16 %v117
    %v688 = vunpack.c.h.b16 %v117
    %v689 = vunpack.c.l.b16 %v118
    %v690 = vunpack.c.h.b16 %v118
    %v691 = vunpack.c.l.b16 %v119
    %v692 = vunpack.c.h.b16 %v119
    %v693 = vunpack.c.l.b16 %v120
    %v694 = vunpack.c.h.b16 %v120
    %v695 = vunpack.c.l.b16 %v121
    %v696 = vunpack.c.h.b16 %v121
    %v697 = vunpack.c.l.b16 %v122
    %v698 = vunpack.c.h.b16 %v122
    %v699 = vunpack.c.l.b16 %v123
    %v700 = vunpack.c.h.b16 %v123
    %v701 = vunpack.c.l.b16 %v124
    %v702 = vunpack.c.h.b16 %v124
    %v703 = vunpack.c.l.b16 %v125
    %v704 = vunpack.c.h.b16 %v125
    %v705 = vunpack.c.l.b16 %v126
    %v706 = vunpack.c.h.b16 %v126
    %v707 = vunpack.c.l.b16 %v127
    %v708 = vunpack.c.h.b16 %v127
    %v709 = vunpack.c.l.b16 %v128
    %v710 = vunpack.c.h.b16 %v128
    %v711 = vpack.c.b16 %v649, %v647
    %v712 = vpack.c.b16 %v650, %v648
    %v713 = vpack.c.b16 %v653, %v651
    %v714 = vpack.c.b16 %v654, %v652
    %v715 = vpack.c.b16 %v657, %v655
    %v716 = vpack.c.b16 %v658, %v656
    %v717 = vpack.c.b16 %v661, %v659
    %v718 = vpack.c.b16 %v662, %v660
    %v719 = vpack.c.b16 %v665, %v663
    %v720 = vpack.c.b16 %v666, %v664
    %v721 = vpack.c.b16 %v669, %v667
    %v722 = vpack.c.b16 %v670, %v668
    %v723 = vpack.c.b16 %v673, %v671
    %v724 = vpack.c.b16 %v674, %v672
    %v725 = vpack.c.b16 %v677, %v675
    %v726 = vpack.c.b16 %v678, %v676
    %v727 = vpack.c.b16 %v681, %v679
    %v728 = vpack.c.b16 %v682, %v680
    %v729 = vpack.c.b16 %v685, %v683
    %v730 = vpack.c.b16 %v686, %v684
    %v731 = vpack.c.b16 %v689, %v687
    %v732 = vpack.c.b16 %v690, %v688
    %v733 = vpack.c.b16 %v693, %v691
    %v734 = vpack.c.b16 %v694, %v692
    %v735 = vpack.c.b16 %v697, %v695
    %v736 = vpack.c.b16 %v698, %v696
    %v737 = vpack.c.b16 %v701, %v699
    %v738 = vpack.c.b16 %v702, %v700
    %v739 = vpack.c.b16 %v705, %v703
    %v740 = vpack.c.b16 %v706, %v704
    %v741 = vpack.c.b16 %v709, %v707
    %v742 = vpack.c.b16 %v710, %v708
    %775 = vmatprep.subr.bf16.mxu0 %v712
    %776 = vmatpush1.bf16.xpose.msra.mxu0 %v711
    %777 = vmatprep.subr.bf16.mxu0 %v714
    %778 = vmatpush1.bf16.xpose.msra.mxu0 %v713
    %779 = vmatprep.subr.bf16.mxu0 %v716
    %780 = vmatpush1.bf16.xpose.msra.mxu0 %v715
    %781 = vmatprep.subr.bf16.mxu0 %v718
    %782 = vmatpush1.bf16.xpose.msra.mxu0 %v717
    %783 = vmatprep.subr.bf16.mxu0 %v720
    %784 = vmatpush1.bf16.xpose.msra.mxu0 %v719
    %785 = vmatprep.subr.bf16.mxu0 %v722
    %786 = vmatpush1.bf16.xpose.msra.mxu0 %v721
    %787 = vmatprep.subr.bf16.mxu0 %v724
    %788 = vmatpush1.bf16.xpose.msra.mxu0 %v723
    %789 = vmatprep.subr.bf16.mxu0 %v726
    %790 = vmatpush1.bf16.xpose.msra.mxu0 %v725
    %791 = vmatprep.subr.bf16.mxu0 %v728
    %792 = vmatpush1.bf16.xpose.msra.mxu0 %v727
    %793 = vmatprep.subr.bf16.mxu0 %v730
    %794 = vmatpush1.bf16.xpose.msra.mxu0 %v729
    %795 = vmatprep.subr.bf16.mxu0 %v732
    %796 = vmatpush1.bf16.xpose.msra.mxu0 %v731
    %797 = vmatprep.subr.bf16.mxu0 %v734
    %798 = vmatpush1.bf16.xpose.msra.mxu0 %v733
    %799 = vmatprep.subr.bf16.mxu0 %v736
    %800 = vmatpush1.bf16.xpose.msra.mxu0 %v735
    %801 = vmatprep.subr.bf16.mxu0 %v738
    %802 = vmatpush1.bf16.xpose.msra.mxu0 %v737
    %803 = vmatprep.subr.bf16.mxu0 %v740
    %804 = vmatpush1.bf16.xpose.msra.mxu0 %v739
    %805 = vmatprep.subr.bf16.mxu0 %v742
    %806 = vmatpush1.bf16.xpose.msra.mxu0 %v741
    %807 = vmatprep.mubr.bf16.mxu0 %v409
    %808 = vmatmul.mubr.bf16.gmra.mrb[0].mxu0 %v408
    %v809 = vpop.f32.mrb[0].mxu0
    %v810 = vadd.f32 0.0, %v809
    %v811 = vpop.f32.mrb[0].mxu0
    %v812 = vadd.f32 0.0, %v811
    %v813 = vpop.f32.mrb[0].mxu0
    %v814 = vpop.f32.mrb[0].mxu0
    %815 = vdwg.mxu0
    %v848 = vunpack.c.l.b16 %v129
    %v849 = vunpack.c.h.b16 %v129
    %v850 = vunpack.c.l.b16 %v130
    %v851 = vunpack.c.h.b16 %v130
    %v852 = vunpack.c.l.b16 %v131
    %v853 = vunpack.c.h.b16 %v131
    %v854 = vunpack.c.l.b16 %v132
    %v855 = vunpack.c.h.b16 %v132
    %v856 = vunpack.c.l.b16 %v133
    %v857 = vunpack.c.h.b16 %v133
    %v858 = vunpack.c.l.b16 %v134
    %v859 = vunpack.c.h.b16 %v134
    %v860 = vunpack.c.l.b16 %v135
    %v861 = vunpack.c.h.b16 %v135
    %v862 = vunpack.c.l.b16 %v136
    %v863 = vunpack.c.h.b16 %v136
    %v864 = vunpack.c.l.b16 %v137
    %v865 = vunpack.c.h.b16 %v137
    %v866 = vunpack.c.l.b16 %v138
    %v867 = vunpack.c.h.b16 %v138
    %v868 = vunpack.c.l.b16 %v139
    %v869 = vunpack.c.h.b16 %v139
    %v870 = vunpack.c.l.b16 %v140
    %v871 = vunpack.c.h.b16 %v140
    %v872 = vunpack.c.l.b16 %v141
    %v873 = vunpack.c.h.b16 %v141
    %v874 = vunpack.c.l.b16 %v142
    %v875 = vunpack.c.h.b16 %v142
    %v876 = vunpack.c.l.b16 %v143
    %v877 = vunpack.c.h.b16 %v143
    %v878 = vunpack.c.l.b16 %v144
    %v879 = vunpack.c.h.b16 %v144
    %v880 = vunpack.c.l.b16 %v145
    %v881 = vunpack.c.h.b16 %v145
    %v882 = vunpack.c.l.b16 %v146
    %v883 = vunpack.c.h.b16 %v146
    %v884 = vunpack.c.l.b16 %v147
    %v885 = vunpack.c.h.b16 %v147
    %v886 = vunpack.c.l.b16 %v148
    %v887 = vunpack.c.h.b16 %v148
    %v888 = vunpack.c.l.b16 %v149
    %v889 = vunpack.c.h.b16 %v149
    %v890 = vunpack.c.l.b16 %v150
    %v891 = vunpack.c.h.b16 %v150
    %v892 = vunpack.c.l.b16 %v151
    %v893 = vunpack.c.h.b16 %v151
    %v894 = vunpack.c.l.b16 %v152
    %v895 = vunpack.c.h.b16 %v152
    %v896 = vunpack.c.l.b16 %v153
    %v897 = vunpack.c.h.b16 %v153
    %v898 = vunpack.c.l.b16 %v154
    %v899 = vunpack.c.h.b16 %v154
    %v900 = vunpack.c.l.b16 %v155
    %v901 = vunpack.c.h.b16 %v155
    %v902 = vunpack.c.l.b16 %v156
    %v903 = vunpack.c.h.b16 %v156
    %v904 = vunpack.c.l.b16 %v157
    %v905 = vunpack.c.h.b16 %v157
    %v906 = vunpack.c.l.b16 %v158
    %v907 = vunpack.c.h.b16 %v158
    %v908 = vunpack.c.l.b16 %v159
    %v909 = vunpack.c.h.b16 %v159
    %v910 = vunpack.c.l.b16 %v160
    %v911 = vunpack.c.h.b16 %v160
    %v912 = vpack.c.b16 %v850, %v848
    %v913 = vpack.c.b16 %v851, %v849
    %v914 = vpack.c.b16 %v854, %v852
    %v915 = vpack.c.b16 %v855, %v853
    %v916 = vpack.c.b16 %v858, %v856
    %v917 = vpack.c.b16 %v859, %v857
    %v918 = vpack.c.b16 %v862, %v860
    %v919 = vpack.c.b16 %v863, %v861
    %v920 = vpack.c.b16 %v866, %v864
    %v921 = vpack.c.b16 %v867, %v865
    %v922 = vpack.c.b16 %v870, %v868
    %v923 = vpack.c.b16 %v871, %v869
    %v924 = vpack.c.b16 %v874, %v872
    %v925 = vpack.c.b16 %v875, %v873
    %v926 = vpack.c.b16 %v878, %v876
    %v927 = vpack.c.b16 %v879, %v877
    %v928 = vpack.c.b16 %v882, %v880
    %v929 = vpack.c.b16 %v883, %v881
    %v930 = vpack.c.b16 %v886, %v884
    %v931 = vpack.c.b16 %v887, %v885
    %v932 = vpack.c.b16 %v890, %v888
    %v933 = vpack.c.b16 %v891, %v889
    %v934 = vpack.c.b16 %v894, %v892
    %v935 = vpack.c.b16 %v895, %v893
    %v936 = vpack.c.b16 %v898, %v896
    %v937 = vpack.c.b16 %v899, %v897
    %v938 = vpack.c.b16 %v902, %v900
    %v939 = vpack.c.b16 %v903, %v901
    %v940 = vpack.c.b16 %v906, %v904
    %v941 = vpack.c.b16 %v907, %v905
    %v942 = vpack.c.b16 %v910, %v908
    %v943 = vpack.c.b16 %v911, %v909
    %976 = vmatprep.subr.bf16.mxu0 %v913
    %977 = vmatpush1.bf16.xpose.msra.mxu0 %v912
    %978 = vmatprep.subr.bf16.mxu0 %v915
    %979 = vmatpush1.bf16.xpose.msra.mxu0 %v914
    %980 = vmatprep.subr.bf16.mxu0 %v917
    %981 = vmatpush1.bf16.xpose.msra.mxu0 %v916
    %982 = vmatprep.subr.bf16.mxu0 %v919
    %983 = vmatpush1.bf16.xpose.msra.mxu0 %v918
    %984 = vmatprep.subr.bf16.mxu0 %v921
    %985 = vmatpush1.bf16.xpose.msra.mxu0 %v920
    %986 = vmatprep.subr.bf16.mxu0 %v923
    %987 = vmatpush1.bf16.xpose.msra.mxu0 %v922
    %988 = vmatprep.subr.bf16.mxu0 %v925
    %989 = vmatpush1.bf16.xpose.msra.mxu0 %v924
    %990 = vmatprep.subr.bf16.mxu0 %v927
    %991 = vmatpush1.bf16.xpose.msra.mxu0 %v926
    %992 = vmatprep.subr.bf16.mxu0 %v929
    %993 = vmatpush1.bf16.xpose.msra.mxu0 %v928
    %994 = vmatprep.subr.bf16.mxu0 %v931
    %995 = vmatpush1.bf16.xpose.msra.mxu0 %v930
    %996 = vmatprep.subr.bf16.mxu0 %v933
    %997 = vmatpush1.bf16.xpose.msra.mxu0 %v932
    %998 = vmatprep.subr.bf16.mxu0 %v935
    %999 = vmatpush1.bf16.xpose.msra.mxu0 %v934
    %1000 = vmatprep.subr.bf16.mxu0 %v937
    %1001 = vmatpush1.bf16.xpose.msra.mxu0 %v936
    %1002 = vmatprep.subr.bf16.mxu0 %v939
    %1003 = vmatpush1.bf16.xpose.msra.mxu0 %v938
    %1004 = vmatprep.subr.bf16.mxu0 %v941
    %1005 = vmatpush1.bf16.xpose.msra.mxu0 %v940
    %1006 = vmatprep.subr.bf16.mxu0 %v943
    %1007 = vmatpush1.bf16.xpose.msra.mxu0 %v942
    %1008 = vmatprep.mubr.bf16.mxu0 %v411
    %1009 = vmatmul.mubr.bf16.gmra.mrb[0].mxu0 %v410
    %v1010 = vpop.f32.mrb[0].mxu0
    %v1011 = vadd.f32 0.0, %v1010
    %v1012 = vpop.f32.mrb[0].mxu0
    %v1013 = vadd.f32 0.0, %v1012
    %v1014 = vpop.f32.mrb[0].mxu0
    %v1015 = vpop.f32.mrb[0].mxu0
    %1016 = vdwg.mxu0
    %v1049 = vunpack.c.l.b16 %v161
    %v1050 = vunpack.c.h.b16 %v161
    %v1051 = vunpack.c.l.b16 %v162
    %v1052 = vunpack.c.h.b16 %v162
    %v1053 = vunpack.c.l.b16 %v163
    %v1054 = vunpack.c.h.b16 %v163
    %v1055 = vunpack.c.l.b16 %v164
    %v1056 = vunpack.c.h.b16 %v164
    %v1057 = vunpack.c.l.b16 %v165
    %v1058 = vunpack.c.h.b16 %v165
    %v1059 = vunpack.c.l.b16 %v166
    %v1060 = vunpack.c.h.b16 %v166
    %v1061 = vunpack.c.l.b16 %v167
    %v1062 = vunpack.c.h.b16 %v167
    %v1063 = vunpack.c.l.b16 %v168
    %v1064 = vunpack.c.h.b16 %v168
    %v1065 = vunpack.c.l.b16 %v169
    %v1066 = vunpack.c.h.b16 %v169
    %v1067 = vunpack.c.l.b16 %v170
    %v1068 = vunpack.c.h.b16 %v170
    %v1069 = vunpack.c.l.b16 %v171
    %v1070 = vunpack.c.h.b16 %v171
    %v1071 = vunpack.c.l.b16 %v172
    %v1072 = vunpack.c.h.b16 %v172
    %v1073 = vunpack.c.l.b16 %v173
    %v1074 = vunpack.c.h.b16 %v173
    %v1075 = vunpack.c.l.b16 %v174
    %v1076 = vunpack.c.h.b16 %v174
    %v1077 = vunpack.c.l.b16 %v175
    %v1078 = vunpack.c.h.b16 %v175
    %v1079 = vunpack.c.l.b16 %v176
    %v1080 = vunpack.c.h.b16 %v176
    %v1081 = vunpack.c.l.b16 %v177
    %v1082 = vunpack.c.h.b16 %v177
    %v1083 = vunpack.c.l.b16 %v178
    %v1084 = vunpack.c.h.b16 %v178
    %v1085 = vunpack.c.l.b16 %v179
    %v1086 = vunpack.c.h.b16 %v179
    %v1087 = vunpack.c.l.b16 %v180
    %v1088 = vunpack.c.h.b16 %v180
    %v1089 = vunpack.c.l.b16 %v181
    %v1090 = vunpack.c.h.b16 %v181
    %v1091 = vunpack.c.l.b16 %v182
    %v1092 = vunpack.c.h.b16 %v182
    %v1093 = vunpack.c.l.b16 %v183
    %v1094 = vunpack.c.h.b16 %v183
    %v1095 = vunpack.c.l.b16 %v184
    %v1096 = vunpack.c.h.b16 %v184
    %v1097 = vunpack.c.l.b16 %v185
    %v1098 = vunpack.c.h.b16 %v185
    %v1099 = vunpack.c.l.b16 %v186
    %v1100 = vunpack.c.h.b16 %v186
    %v1101 = vunpack.c.l.b16 %v187
    %v1102 = vunpack.c.h.b16 %v187
    %v1103 = vunpack.c.l.b16 %v188
    %v1104 = vunpack.c.h.b16 %v188
    %v1105 = vunpack.c.l.b16 %v189
    %v1106 = vunpack.c.h.b16 %v189
    %v1107 = vunpack.c.l.b16 %v190
    %v1108 = vunpack.c.h.b16 %v190
    %v1109 = vunpack.c.l.b16 %v191
    %v1110 = vunpack.c.h.b16 %v191
    %v1111 = vunpack.c.l.b16 %v192
    %v1112 = vunpack.c.h.b16 %v192
    %v1113 = vpack.c.b16 %v1051, %v1049
    %v1114 = vpack.c.b16 %v1052, %v1050
    %v1115 = vpack.c.b16 %v1055, %v1053
    %v1116 = vpack.c.b16 %v1056, %v1054
    %v1117 = vpack.c.b16 %v1059, %v1057
    %v1118 = vpack.c.b16 %v1060, %v1058
    %v1119 = vpack.c.b16 %v1063, %v1061
    %v1120 = vpack.c.b16 %v1064, %v1062
    %v1121 = vpack.c.b16 %v1067, %v1065
    %v1122 = vpack.c.b16 %v1068, %v1066
    %v1123 = vpack.c.b16 %v1071, %v1069
    %v1124 = vpack.c.b16 %v1072, %v1070
    %v1125 = vpack.c.b16 %v1075, %v1073
    %v1126 = vpack.c.b16 %v1076, %v1074
    %v1127 = vpack.c.b16 %v1079, %v1077
    %v1128 = vpack.c.b16 %v1080, %v1078
    %v1129 = vpack.c.b16 %v1083, %v1081
    %v1130 = vpack.c.b16 %v1084, %v1082
    %v1131 = vpack.c.b16 %v1087, %v1085
    %v1132 = vpack.c.b16 %v1088, %v1086
    %v1133 = vpack.c.b16 %v1091, %v1089
    %v1134 = vpack.c.b16 %v1092, %v1090
    %v1135 = vpack.c.b16 %v1095, %v1093
    %v1136 = vpack.c.b16 %v1096, %v1094
    %v1137 = vpack.c.b16 %v1099, %v1097
    %v1138 = vpack.c.b16 %v1100, %v1098
    %v1139 = vpack.c.b16 %v1103, %v1101
    %v1140 = vpack.c.b16 %v1104, %v1102
    %v1141 = vpack.c.b16 %v1107, %v1105
    %v1142 = vpack.c.b16 %v1108, %v1106
    %v1143 = vpack.c.b16 %v1111, %v1109
    %v1144 = vpack.c.b16 %v1112, %v1110
    %1177 = vmatprep.subr.bf16.mxu0 %v1114
    %1178 = vmatpush1.bf16.xpose.msra.mxu0 %v1113
    %1179 = vmatprep.subr.bf16.mxu0 %v1116
    %1180 = vmatpush1.bf16.xpose.msra.mxu0 %v1115
    %1181 = vmatprep.subr.bf16.mxu0 %v1118
    %1182 = vmatpush1.bf16.xpose.msra.mxu0 %v1117
    %1183 = vmatprep.subr.bf16.mxu0 %v1120
    %1184 = vmatpush1.bf16.xpose.msra.mxu0 %v1119
    %1185 = vmatprep.subr.bf16.mxu0 %v1122
    %1186 = vmatpush1.bf16.xpose.msra.mxu0 %v1121
    %1187 = vmatprep.subr.bf16.mxu0 %v1124
    %1188 = vmatpush1.bf16.xpose.msra.mxu0 %v1123
    %1189 = vmatprep.subr.bf16.mxu0 %v1126
    %1190 = vmatpush1.bf16.xpose.msra.mxu0 %v1125
    %1191 = vmatprep.subr.bf16.mxu0 %v1128
    %1192 = vmatpush1.bf16.xpose.msra.mxu0 %v1127
    %1193 = vmatprep.subr.bf16.mxu0 %v1130
    %1194 = vmatpush1.bf16.xpose.msra.mxu0 %v1129
    %1195 = vmatprep.subr.bf16.mxu0 %v1132
    %1196 = vmatpush1.bf16.xpose.msra.mxu0 %v1131
    %1197 = vmatprep.subr.bf16.mxu0 %v1134
    %1198 = vmatpush1.bf16.xpose.msra.mxu0 %v1133
    %1199 = vmatprep.subr.bf16.mxu0 %v1136
    %1200 = vmatpush1.bf16.xpose.msra.mxu0 %v1135
    %1201 = vmatprep.subr.bf16.mxu0 %v1138
    %1202 = vmatpush1.bf16.xpose.msra.mxu0 %v1137
    %1203 = vmatprep.subr.bf16.mxu0 %v1140
    %1204 = vmatpush1.bf16.xpose.msra.mxu0 %v1139
    %1205 = vmatprep.subr.bf16.mxu0 %v1142
    %1206 = vmatpush1.bf16.xpose.msra.mxu0 %v1141
    %1207 = vmatprep.subr.bf16.mxu0 %v1144
    %1208 = vmatpush1.bf16.xpose.msra.mxu0 %v1143
    %1209 = vmatprep.mubr.bf16.mxu0 %v413
    %1210 = vmatmul.mubr.bf16.gmra.mrb[0].mxu0 %v412
    %v1211 = vpop.f32.mrb[0].mxu0
    %v1212 = vadd.f32 0.0, %v1211
    %v1213 = vpop.f32.mrb[0].mxu0
    %v1214 = vadd.f32 0.0, %v1213
    %v1215 = vpop.f32.mrb[0].mxu0
    %v1216 = vpop.f32.mrb[0].mxu0
    %1217 = vdwg.mxu0
    %v1218 = vsub.f32 %v609, %v208
    %v1219 = vsub.f32 %v611, %v212
    %v1220 = vsub.f32 %v810, %v208
    %v1221 = vsub.f32 %v812, %v212
    %v1222 = vsub.f32 %v1011, %v208
    %v1223 = vsub.f32 %v1013, %v212
    %v1224 = vsub.f32 %v1212, %v208
    %v1225 = vsub.f32 %v1214, %v212
    %v1226 = vmax.f32 %v1218, %v1219
    %1227 = vmax.xlane.f32.xlu0 %v1226
    %v1228 = vpop.xlane.xlu0 %1227
    %v1229 = vmax.f32 %v1220, %v1221
    %1230 = vmax.xlane.f32.xlu0 %v1229
    %v1231 = vpop.xlane.xlu0 %1230
    %v1232 = vmax.f32 %v1222, %v1223
    %1233 = vmax.xlane.f32.xlu0 %v1232
    %v1234 = vpop.xlane.xlu0 %1233
    %v1235 = vmax.f32 %v1224, %v1225
    %1236 = vmax.xlane.f32.xlu0 %v1235
    %v1237 = vpop.xlane.xlu0 %1236
    %v1238 = vsub.f32 %v609, %v1228
    %v1239 = vsub.f32 %v611, %v1228
    %v1240 = vsub.f32 %v810, %v1231
    %v1241 = vsub.f32 %v812, %v1231
    %v1242 = vsub.f32 %v1011, %v1234
    %v1243 = vsub.f32 %v1013, %v1234
    %v1244 = vsub.f32 %v1212, %v1237
    %v1245 = vsub.f32 %v1214, %v1237
    %v1246 = vmul.f32 %v1238, 1.442695
    %v1247 = vpow.pop %v1246
    %v1248 = vmul.f32 %v1239, 1.442695
    %v1249 = vpow.pop %v1248
    %v1250 = vmul.f32 %v1240, 1.442695
    %v1251 = vpow.pop %v1250
    %v1252 = vmul.f32 %v1241, 1.442695
    %v1253 = vpow.pop %v1252
    %v1254 = vmul.f32 %v1242, 1.442695
    %v1255 = vpow.pop %v1254
    %v1256 = vmul.f32 %v1243, 1.442695
    %v1257 = vpow.pop %v1256
    %v1258 = vmul.f32 %v1244, 1.442695
    %v1259 = vpow.pop %v1258
    %v1260 = vmul.f32 %v1245, 1.442695
    %v1261 = vpow.pop %v1260
    %v1262 = vmul.f32 %v1247, %v263
    %v1263 = vmul.f32 %v1249, %v267
    %v1264 = vmul.f32 %v1251, %v263
    %v1265 = vmul.f32 %v1253, %v267
    %v1266 = vmul.f32 %v1255, %v263
    %v1267 = vmul.f32 %v1257, %v267
    %v1268 = vmul.f32 %v1259, %v263
    %v1269 = vmul.f32 %v1261, %v267
    %v1270 = vadd.f32 %v1262, %v1263
    %1271 = vadd.xlane.f32.xlu0 %v1270
    %v1272 = vpop.xlane.xlu0 %1271
    %v1273 = vadd.f32 %v1264, %v1265
    %1274 = vadd.xlane.f32.xlu0 %v1273
    %v1275 = vpop.xlane.xlu0 %1274
    %v1276 = vadd.f32 %v1266, %v1267
    %1277 = vadd.xlane.f32.xlu0 %v1276
    %v1278 = vpop.xlane.xlu0 %1277
    %v1279 = vadd.f32 %v1268, %v1269
    %1280 = vadd.xlane.f32.xlu0 %v1279
    %v1281 = vpop.xlane.xlu0 %1280
    %v1282 = vrcp.pop %v1272
    %v1283 = vrcp.pop %v1275
    %v1284 = vrcp.pop %v1278
    %v1285 = vrcp.pop %v1281
    %v1286 = vmul.f32 %v1262, %v1282
    %v1287 = vmul.f32 %v1263, %v1282
    %v1288 = vmul.f32 %v1264, %v1283
    %v1289 = vmul.f32 %v1265, %v1283
    %v1290 = vmul.f32 %v1266, %v1284
    %v1291 = vmul.f32 %v1267, %v1284
    %v1292 = vmul.f32 %v1268, %v1285
    %v1293 = vmul.f32 %v1269, %v1285
    %v1294 = vsub.f32 1.0, %v1286
    %v1295 = vsub.f32 1.0, %v1287
    %v1296 = vsub.f32 1.0, %v1288
    %v1297 = vsub.f32 1.0, %v1289
    %v1298 = vsub.f32 1.0, %v1290
    %v1299 = vsub.f32 1.0, %v1291
    %v1300 = vsub.f32 1.0, %v1292
    %v1301 = vsub.f32 1.0, %v1293
    %v1302 = vmul.f32 %v1286, %v1294
    %v1303 = vmul.f32 %v1287, %v1295
    %v1304 = vmul.f32 %v1288, %v1296
    %v1305 = vmul.f32 %v1289, %v1297
    %v1306 = vmul.f32 %v1290, %v1298
    %v1307 = vmul.f32 %v1291, %v1299
    %v1308 = vmul.f32 %v1292, %v1300
    %v1309 = vmul.f32 %v1293, %v1301
    %v1310 = vmax.f32 %v1302, 0.0
    %v1311 = vmax.f32 %v1303, 0.0
    %v1312 = vmax.f32 %v1304, 0.0
    %v1313 = vmax.f32 %v1305, 0.0
    %v1314 = vmax.f32 %v1306, 0.0
    %v1315 = vmax.f32 %v1307, 0.0
    %v1316 = vmax.f32 %v1308, 0.0
    %v1317 = vmax.f32 %v1309, 0.0
    %s1318 = scalar_lea.vmem [#allocation7], 64
    %v1319 = vld [vmem:[%s1318] sm:$0xff]
    %v1320 = vld [vmem:[%s1318 + $0x8] sm:$0xff]
    %v1321 = vld [vmem:[%s1318 + $0x10] sm:$0xff]
    %v1322 = vld [vmem:[%s1318 + $0x18] sm:$0xff]
    %v1323 = vld [vmem:[%s1318 + $0x20] sm:$0xff]
    %v1324 = vld [vmem:[%s1318 + $0x28] sm:$0xff]
    %v1325 = vld [vmem:[%s1318 + $0x30] sm:$0xff]
    %v1326 = vld [vmem:[%s1318 + $0x38] sm:$0xff]
    %v1327 = vrsqrt.pop %v1310
    %v1328 = vmul.f32 %v1310, %v1327
    %vm1329 = vcmp.eq.f32.partialorder %v1310, inf
    %v1330 = vsel %vm1329, %v1310, %v1328
    %vm1331 = vcmp.eq.f32.partialorder %v1310, 0.0
    %v1332 = vand.u32 %v1310, 2147483648
    %v1333 = vsel %vm1331, %v1332, %v1330
    %v1334 = vrsqrt.pop %v1311
    %v1335 = vmul.f32 %v1311, %v1334
    %vm1336 = vcmp.eq.f32.partialorder %v1311, inf
    %v1337 = vsel %vm1336, %v1311, %v1335
    %vm1338 = vcmp.eq.f32.partialorder %v1311, 0.0
    %v1339 = vand.u32 %v1311, 2147483648
    %v1340 = vsel %vm1338, %v1339, %v1337
    %v1341 = vrsqrt.pop %v1312
    %v1342 = vmul.f32 %v1312, %v1341
    %vm1343 = vcmp.eq.f32.partialorder %v1312, inf
    %v1344 = vsel %vm1343, %v1312, %v1342
    %vm1345 = vcmp.eq.f32.partialorder %v1312, 0.0
    %v1346 = vand.u32 %v1312, 2147483648
    %v1347 = vsel %vm1345, %v1346, %v1344
    %v1348 = vrsqrt.pop %v1313
    %v1349 = vmul.f32 %v1313, %v1348
    %vm1350 = vcmp.eq.f32.partialorder %v1313, inf
    %v1351 = vsel %vm1350, %v1313, %v1349
    %vm1352 = vcmp.eq.f32.partialorder %v1313, 0.0
    %v1353 = vand.u32 %v1313, 2147483648
    %v1354 = vsel %vm1352, %v1353, %v1351
    %v1355 = vrsqrt.pop %v1314
    %v1356 = vmul.f32 %v1314, %v1355
    %vm1357 = vcmp.eq.f32.partialorder %v1314, inf
    %v1358 = vsel %vm1357, %v1314, %v1356
    %vm1359 = vcmp.eq.f32.partialorder %v1314, 0.0
    %v1360 = vand.u32 %v1314, 2147483648
    %v1361 = vsel %vm1359, %v1360, %v1358
    %v1362 = vrsqrt.pop %v1315
    %v1363 = vmul.f32 %v1315, %v1362
    %vm1364 = vcmp.eq.f32.partialorder %v1315, inf
    %v1365 = vsel %vm1364, %v1315, %v1363
    %vm1366 = vcmp.eq.f32.partialorder %v1315, 0.0
    %v1367 = vand.u32 %v1315, 2147483648
    %v1368 = vsel %vm1366, %v1367, %v1365
    %v1369 = vrsqrt.pop %v1316
    %v1370 = vmul.f32 %v1316, %v1369
    %vm1371 = vcmp.eq.f32.partialorder %v1316, inf
    %v1372 = vsel %vm1371, %v1316, %v1370
    %vm1373 = vcmp.eq.f32.partialorder %v1316, 0.0
    %v1374 = vand.u32 %v1316, 2147483648
    %v1375 = vsel %vm1373, %v1374, %v1372
    %v1376 = vrsqrt.pop %v1317
    %v1377 = vmul.f32 %v1317, %v1376
    %vm1378 = vcmp.eq.f32.partialorder %v1317, inf
    %v1379 = vsel %vm1378, %v1317, %v1377
    %vm1380 = vcmp.eq.f32.partialorder %v1317, 0.0
    %v1381 = vand.u32 %v1317, 2147483648
    %v1382 = vsel %vm1380, %v1381, %v1379
    %v1383 = vmul.f32 %v1319, %v1333
    %v1384 = vmul.f32 %v1320, %v1340
    %v1385 = vmul.f32 %v1321, %v1347
    %v1386 = vmul.f32 %v1322, %v1354
    %v1387 = vmul.f32 %v1323, %v1361
    %v1388 = vmul.f32 %v1324, %v1368
    %v1389 = vmul.f32 %v1325, %v1375
    %v1390 = vmul.f32 %v1326, %v1382
    %v1391 = vadd.f32 %v1286, %v1383
    %v1392 = vadd.f32 %v1287, %v1384
    %v1393 = vadd.f32 %v1288, %v1385
    %v1394 = vadd.f32 %v1289, %v1386
    %v1395 = vadd.f32 %v1290, %v1387
    %v1396 = vadd.f32 %v1291, %v1388
    %v1397 = vadd.f32 %v1292, %v1389
    %v1398 = vadd.f32 %v1293, %v1390
    %v1399 = vpack.c.bf16 %v1391, %v1391
    %v1400 = vpack.c.bf16 %v1392, %v1392
    %v1401 = vpack.c.bf16 %v1393, %v1393
    %v1402 = vpack.c.bf16 %v1394, %v1394
    %v1403 = vpack.c.bf16 %v1395, %v1395
    %v1404 = vpack.c.bf16 %v1396, %v1396
    %v1405 = vpack.c.bf16 %v1397, %v1397
    %v1406 = vpack.c.bf16 %v1398, %v1398
    %1407 = vmatprep.subr.bf16.mxu0 %v511
    %1408 = vmatpush1.bf16.xpose.msra.mxu0 %v510
    %1409 = vmatprep.subr.bf16.mxu0 %v513
    %1410 = vmatpush1.bf16.xpose.msra.mxu0 %v512
    %1411 = vmatprep.subr.bf16.mxu0 %v515
    %1412 = vmatpush1.bf16.xpose.msra.mxu0 %v514
    %1413 = vmatprep.subr.bf16.mxu0 %v517
    %1414 = vmatpush1.bf16.xpose.msra.mxu0 %v516
    %1415 = vmatprep.subr.bf16.mxu0 %v519
    %1416 = vmatpush1.bf16.xpose.msra.mxu0 %v518
    %1417 = vmatprep.subr.bf16.mxu0 %v521
    %1418 = vmatpush1.bf16.xpose.msra.mxu0 %v520
    %1419 = vmatprep.subr.bf16.mxu0 %v523
    %1420 = vmatpush1.bf16.xpose.msra.mxu0 %v522
    %1421 = vmatprep.subr.bf16.mxu0 %v525
    %1422 = vmatpush1.bf16.xpose.msra.mxu0 %v524
    %1423 = vmatprep.subr.bf16.mxu0 %v527
    %1424 = vmatpush1.bf16.xpose.msra.mxu0 %v526
    %1425 = vmatprep.subr.bf16.mxu0 %v529
    %1426 = vmatpush1.bf16.xpose.msra.mxu0 %v528
    %1427 = vmatprep.subr.bf16.mxu0 %v531
    %1428 = vmatpush1.bf16.xpose.msra.mxu0 %v530
    %1429 = vmatprep.subr.bf16.mxu0 %v533
    %1430 = vmatpush1.bf16.xpose.msra.mxu0 %v532
    %1431 = vmatprep.subr.bf16.mxu0 %v535
    %1432 = vmatpush1.bf16.xpose.msra.mxu0 %v534
    %1433 = vmatprep.subr.bf16.mxu0 %v537
    %1434 = vmatpush1.bf16.xpose.msra.mxu0 %v536
    %1435 = vmatprep.subr.bf16.mxu0 %v539
    %1436 = vmatpush1.bf16.xpose.msra.mxu0 %v538
    %1437 = vmatprep.subr.bf16.mxu0 %v541
    %1438 = vmatpush1.bf16.xpose.msra.mxu0 %v540
    %1439 = vmatprep.mubr.bf16.mxu0 %v1400
    %1440 = vmatmul.mubr.bf16.gmra.mrb[0].mxu0 %v1399
    %v1441 = vpop.f32.mrb[0].mxu0
    %v1442 = vadd.f32 0.0, %v1441
    %v1443 = vpop.f32.mrb[0].mxu0
    %v1444 = vadd.f32 0.0, %v1443
    %v1445 = vpop.f32.mrb[0].mxu0
    %v1446 = vpop.f32.mrb[0].mxu0
    %1447 = vdwg.mxu0
    %1448 = vmatprep.subr.bf16.mxu0 %v712
    %1449 = vmatpush1.bf16.xpose.msra.mxu0 %v711
    %1450 = vmatprep.subr.bf16.mxu0 %v714
    %1451 = vmatpush1.bf16.xpose.msra.mxu0 %v713
    %1452 = vmatprep.subr.bf16.mxu0 %v716
    %1453 = vmatpush1.bf16.xpose.msra.mxu0 %v715
    %1454 = vmatprep.subr.bf16.mxu0 %v718
    %1455 = vmatpush1.bf16.xpose.msra.mxu0 %v717
    %1456 = vmatprep.subr.bf16.mxu0 %v720
    %1457 = vmatpush1.bf16.xpose.msra.mxu0 %v719
    %1458 = vmatprep.subr.bf16.mxu0 %v722
    %1459 = vmatpush1.bf16.xpose.msra.mxu0 %v721
    %1460 = vmatprep.subr.bf16.mxu0 %v724
    %1461 = vmatpush1.bf16.xpose.msra.mxu0 %v723
    %1462 = vmatprep.subr.bf16.mxu0 %v726
    %1463 = vmatpush1.bf16.xpose.msra.mxu0 %v725
    %1464 = vmatprep.subr.bf16.mxu0 %v728
    %1465 = vmatpush1.bf16.xpose.msra.mxu0 %v727
    %1466 = vmatprep.subr.bf16.mxu0 %v730
    %1467 = vmatpush1.bf16.xpose.msra.mxu0 %v729
    %1468 = vmatprep.subr.bf16.mxu0 %v732
    %1469 = vmatpush1.bf16.xpose.msra.mxu0 %v731
    %1470 = vmatprep.subr.bf16.mxu0 %v734
    %1471 = vmatpush1.bf16.xpose.msra.mxu0 %v733
    %1472 = vmatprep.subr.bf16.mxu0 %v736
    %1473 = vmatpush1.bf16.xpose.msra.mxu0 %v735
    %1474 = vmatprep.subr.bf16.mxu0 %v738
    %1475 = vmatpush1.bf16.xpose.msra.mxu0 %v737
    %1476 = vmatprep.subr.bf16.mxu0 %v740
    %1477 = vmatpush1.bf16.xpose.msra.mxu0 %v739
    %1478 = vmatprep.subr.bf16.mxu0 %v742
    %1479 = vmatpush1.bf16.xpose.msra.mxu0 %v741
    %1480 = vmatprep.mubr.bf16.mxu0 %v1402
    %1481 = vmatmul.mubr.bf16.gmra.mrb[0].mxu0 %v1401
    %v1482 = vpop.f32.mrb[0].mxu0
    %v1483 = vadd.f32 0.0, %v1482
    %v1484 = vpop.f32.mrb[0].mxu0
    %v1485 = vadd.f32 0.0, %v1484
    %v1486 = vpop.f32.mrb[0].mxu0
    %v1487 = vpop.f32.mrb[0].mxu0
    %1488 = vdwg.mxu0
    %1489 = vmatprep.subr.bf16.mxu0 %v913
    %1490 = vmatpush1.bf16.xpose.msra.mxu0 %v912
    %1491 = vmatprep.subr.bf16.mxu0 %v915
    %1492 = vmatpush1.bf16.xpose.msra.mxu0 %v914
    %1493 = vmatprep.subr.bf16.mxu0 %v917
    %1494 = vmatpush1.bf16.xpose.msra.mxu0 %v916
    %1495 = vmatprep.subr.bf16.mxu0 %v919
    %1496 = vmatpush1.bf16.xpose.msra.mxu0 %v918
    %1497 = vmatprep.subr.bf16.mxu0 %v921
    %1498 = vmatpush1.bf16.xpose.msra.mxu0 %v920
    %1499 = vmatprep.subr.bf16.mxu0 %v923
    %1500 = vmatpush1.bf16.xpose.msra.mxu0 %v922
    %1501 = vmatprep.subr.bf16.mxu0 %v925
    %1502 = vmatpush1.bf16.xpose.msra.mxu0 %v924
    %1503 = vmatprep.subr.bf16.mxu0 %v927
    %1504 = vmatpush1.bf16.xpose.msra.mxu0 %v926
    %1505 = vmatprep.subr.bf16.mxu0 %v929
    %1506 = vmatpush1.bf16.xpose.msra.mxu0 %v928
    %1507 = vmatprep.subr.bf16.mxu0 %v931
    %1508 = vmatpush1.bf16.xpose.msra.mxu0 %v930
    %1509 = vmatprep.subr.bf16.mxu0 %v933
    %1510 = vmatpush1.bf16.xpose.msra.mxu0 %v932
    %1511 = vmatprep.subr.bf16.mxu0 %v935
    %1512 = vmatpush1.bf16.xpose.msra.mxu0 %v934
    %1513 = vmatprep.subr.bf16.mxu0 %v937
    %1514 = vmatpush1.bf16.xpose.msra.mxu0 %v936
    %1515 = vmatprep.subr.bf16.mxu0 %v939
    %1516 = vmatpush1.bf16.xpose.msra.mxu0 %v938
    %1517 = vmatprep.subr.bf16.mxu0 %v941
    %1518 = vmatpush1.bf16.xpose.msra.mxu0 %v940
    %1519 = vmatprep.subr.bf16.mxu0 %v943
    %1520 = vmatpush1.bf16.xpose.msra.mxu0 %v942
    %1521 = vmatprep.mubr.bf16.mxu0 %v1404
    %1522 = vmatmul.mubr.bf16.gmra.mrb[0].mxu0 %v1403
    %v1523 = vpop.f32.mrb[0].mxu0
    %v1524 = vadd.f32 0.0, %v1523
    %v1525 = vpop.f32.mrb[0].mxu0
    %v1526 = vadd.f32 0.0, %v1525
    %v1527 = vpop.f32.mrb[0].mxu0
    %v1528 = vpop.f32.mrb[0].mxu0
    %1529 = vdwg.mxu0
    %1530 = vmatprep.subr.bf16.mxu0 %v1114
    %1531 = vmatpush1.bf16.xpose.msra.mxu0 %v1113
    %1532 = vmatprep.subr.bf16.mxu0 %v1116
    %1533 = vmatpush1.bf16.xpose.msra.mxu0 %v1115
    %1534 = vmatprep.subr.bf16.mxu0 %v1118
    %1535 = vmatpush1.bf16.xpose.msra.mxu0 %v1117
    %1536 = vmatprep.subr.bf16.mxu0 %v1120
    %1537 = vmatpush1.bf16.xpose.msra.mxu0 %v1119
    %1538 = vmatprep.subr.bf16.mxu0 %v1122
    %1539 = vmatpush1.bf16.xpose.msra.mxu0 %v1121
    %1540 = vmatprep.subr.bf16.mxu0 %v1124
    %1541 = vmatpush1.bf16.xpose.msra.mxu0 %v1123
    %1542 = vmatprep.subr.bf16.mxu0 %v1126
    %1543 = vmatpush1.bf16.xpose.msra.mxu0 %v1125
    %1544 = vmatprep.subr.bf16.mxu0 %v1128
    %1545 = vmatpush1.bf16.xpose.msra.mxu0 %v1127
    %1546 = vmatprep.subr.bf16.mxu0 %v1130
    %1547 = vmatpush1.bf16.xpose.msra.mxu0 %v1129
    %1548 = vmatprep.subr.bf16.mxu0 %v1132
    %1549 = vmatpush1.bf16.xpose.msra.mxu0 %v1131
    %1550 = vmatprep.subr.bf16.mxu0 %v1134
    %1551 = vmatpush1.bf16.xpose.msra.mxu0 %v1133
    %1552 = vmatprep.subr.bf16.mxu0 %v1136
    %1553 = vmatpush1.bf16.xpose.msra.mxu0 %v1135
    %1554 = vmatprep.subr.bf16.mxu0 %v1138
    %1555 = vmatpush1.bf16.xpose.msra.mxu0 %v1137
    %1556 = vmatprep.subr.bf16.mxu0 %v1140
    %1557 = vmatpush1.bf16.xpose.msra.mxu0 %v1139
    %1558 = vmatprep.subr.bf16.mxu0 %v1142
    %1559 = vmatpush1.bf16.xpose.msra.mxu0 %v1141
    %1560 = vmatprep.subr.bf16.mxu0 %v1144
    %1561 = vmatpush1.bf16.xpose.msra.mxu0 %v1143
    %1562 = vmatprep.mubr.bf16.mxu0 %v1406
    %1563 = vmatmul.mubr.bf16.gmra.mrb[0].mxu0 %v1405
    %v1564 = vpop.f32.mrb[0].mxu0
    %v1565 = vadd.f32 0.0, %v1564
    %v1566 = vpop.f32.mrb[0].mxu0
    %v1567 = vadd.f32 0.0, %v1566
    %v1568 = vpop.f32.mrb[0].mxu0
    %v1569 = vpop.f32.mrb[0].mxu0
    %1570 = vdwg.mxu0
    %v1571 = vsub.f32 %v1442, %v208
    %v1572 = vsub.f32 %v1444, %v212
    %v1573 = vsub.f32 %v1483, %v208
    %v1574 = vsub.f32 %v1485, %v212
    %v1575 = vsub.f32 %v1524, %v208
    %v1576 = vsub.f32 %v1526, %v212
    %v1577 = vsub.f32 %v1565, %v208
    %v1578 = vsub.f32 %v1567, %v212
    %v1579 = vmax.f32 %v1571, %v1572
    %1580 = vmax.xlane.f32.xlu0 %v1579
    %v1581 = vpop.xlane.xlu0 %1580
    %v1582 = vmax.f32 %v1573, %v1574
    %1583 = vmax.xlane.f32.xlu0 %v1582
    %v1584 = vpop.xlane.xlu0 %1583
    %v1585 = vmax.f32 %v1575, %v1576
    %1586 = vmax.xlane.f32.xlu0 %v1585
    %v1587 = vpop.xlane.xlu0 %1586
    %v1588 = vmax.f32 %v1577, %v1578
    %1589 = vmax.xlane.f32.xlu0 %v1588
    %v1590 = vpop.xlane.xlu0 %1589
    %v1591 = vsub.f32 %v1442, %v1581
    %v1592 = vsub.f32 %v1444, %v1581
    %v1593 = vsub.f32 %v1483, %v1584
    %v1594 = vsub.f32 %v1485, %v1584
    %v1595 = vsub.f32 %v1524, %v1587
    %v1596 = vsub.f32 %v1526, %v1587
    %v1597 = vsub.f32 %v1565, %v1590
    %v1598 = vsub.f32 %v1567, %v1590
    %v1599 = vmul.f32 %v1591, 1.442695
    %v1600 = vpow.pop %v1599
    %v1601 = vmul.f32 %v1592, 1.442695
    %v1602 = vpow.pop %v1601
    %v1603 = vmul.f32 %v1593, 1.442695
    %v1604 = vpow.pop %v1603
    %v1605 = vmul.f32 %v1594, 1.442695
    %v1606 = vpow.pop %v1605
    %v1607 = vmul.f32 %v1595, 1.442695
    %v1608 = vpow.pop %v1607
    %v1609 = vmul.f32 %v1596, 1.442695
    %v1610 = vpow.pop %v1609
    %v1611 = vmul.f32 %v1597, 1.442695
    %v1612 = vpow.pop %v1611
    %v1613 = vmul.f32 %v1598, 1.442695
    %v1614 = vpow.pop %v1613
    %v1615 = vmul.f32 %v1600, %v263
    %v1616 = vmul.f32 %v1602, %v267
    %v1617 = vmul.f32 %v1604, %v263
    %v1618 = vmul.f32 %v1606, %v267
    %v1619 = vmul.f32 %v1608, %v263
    %v1620 = vmul.f32 %v1610, %v267
    %v1621 = vmul.f32 %v1612, %v263
    %v1622 = vmul.f32 %v1614, %v267
    %v1623 = vadd.f32 %v1615, %v1616
    %1624 = vadd.xlane.f32.xlu0 %v1623
    %v1625 = vpop.xlane.xlu0 %1624
    %v1626 = vadd.f32 %v1617, %v1618
    %1627 = vadd.xlane.f32.xlu0 %v1626
    %v1628 = vpop.xlane.xlu0 %1627
    %v1629 = vadd.f32 %v1619, %v1620
    %1630 = vadd.xlane.f32.xlu0 %v1629
    %v1631 = vpop.xlane.xlu0 %1630
    %v1632 = vadd.f32 %v1621, %v1622
    %1633 = vadd.xlane.f32.xlu0 %v1632
    %v1634 = vpop.xlane.xlu0 %1633
    %v1635 = vrcp.pop %v1625
    %v1636 = vrcp.pop %v1628
    %v1637 = vrcp.pop %v1631
    %v1638 = vrcp.pop %v1634
    %v1639 = vmul.f32 %v1615, %v1635
    %v1640 = vmul.f32 %v1616, %v1635
    %v1641 = vmul.f32 %v1617, %v1636
    %v1642 = vmul.f32 %v1618, %v1636
    %v1643 = vmul.f32 %v1619, %v1637
    %v1644 = vmul.f32 %v1620, %v1637
    %v1645 = vmul.f32 %v1621, %v1638
    %v1646 = vmul.f32 %v1622, %v1638
    %v1647 = vsub.f32 1.0, %v1639
    %v1648 = vsub.f32 1.0, %v1640
    %v1649 = vsub.f32 1.0, %v1641
    %v1650 = vsub.f32 1.0, %v1642
    %v1651 = vsub.f32 1.0, %v1643
    %v1652 = vsub.f32 1.0, %v1644
    %v1653 = vsub.f32 1.0, %v1645
    %v1654 = vsub.f32 1.0, %v1646
    %v1655 = vmul.f32 %v1639, %v1647
    %v1656 = vmul.f32 %v1640, %v1648
    %v1657 = vmul.f32 %v1641, %v1649
    %v1658 = vmul.f32 %v1642, %v1650
    %v1659 = vmul.f32 %v1643, %v1651
    %v1660 = vmul.f32 %v1644, %v1652
    %v1661 = vmul.f32 %v1645, %v1653
    %v1662 = vmul.f32 %v1646, %v1654
    %v1663 = vmax.f32 %v1655, 0.0
    %v1664 = vmax.f32 %v1656, 0.0
    %v1665 = vmax.f32 %v1657, 0.0
    %v1666 = vmax.f32 %v1658, 0.0
    %v1667 = vmax.f32 %v1659, 0.0
    %v1668 = vmax.f32 %v1660, 0.0
    %v1669 = vmax.f32 %v1661, 0.0
    %v1670 = vmax.f32 %v1662, 0.0
    %s1671 = scalar_lea.vmem [#allocation7], 128
    %v1672 = vld [vmem:[%s1671] sm:$0xff]
    %v1673 = vld [vmem:[%s1671 + $0x8] sm:$0xff]
    %v1674 = vld [vmem:[%s1671 + $0x10] sm:$0xff]
    %v1675 = vld [vmem:[%s1671 + $0x18] sm:$0xff]
    %v1676 = vld [vmem:[%s1671 + $0x20] sm:$0xff]
    %v1677 = vld [vmem:[%s1671 + $0x28] sm:$0xff]
    %v1678 = vld [vmem:[%s1671 + $0x30] sm:$0xff]
    %v1679 = vld [vmem:[%s1671 + $0x38] sm:$0xff]
    %v1680 = vrsqrt.pop %v1663
    %v1681 = vmul.f32 %v1663, %v1680
    %vm1682 = vcmp.eq.f32.partialorder %v1663, inf
    %v1683 = vsel %vm1682, %v1663, %v1681
    %vm1684 = vcmp.eq.f32.partialorder %v1663, 0.0
    %v1685 = vand.u32 %v1663, 2147483648
    %v1686 = vsel %vm1684, %v1685, %v1683
    %v1687 = vrsqrt.pop %v1664
    %v1688 = vmul.f32 %v1664, %v1687
    %vm1689 = vcmp.eq.f32.partialorder %v1664, inf
    %v1690 = vsel %vm1689, %v1664, %v1688
    %vm1691 = vcmp.eq.f32.partialorder %v1664, 0.0
    %v1692 = vand.u32 %v1664, 2147483648
    %v1693 = vsel %vm1691, %v1692, %v1690
    %v1694 = vrsqrt.pop %v1665
    %v1695 = vmul.f32 %v1665, %v1694
    %vm1696 = vcmp.eq.f32.partialorder %v1665, inf
    %v1697 = vsel %vm1696, %v1665, %v1695
    %vm1698 = vcmp.eq.f32.partialorder %v1665, 0.0
    %v1699 = vand.u32 %v1665, 2147483648
    %v1700 = vsel %vm1698, %v1699, %v1697
    %v1701 = vrsqrt.pop %v1666
    %v1702 = vmul.f32 %v1666, %v1701
    %vm1703 = vcmp.eq.f32.partialorder %v1666, inf
    %v1704 = vsel %vm1703, %v1666, %v1702
    %vm1705 = vcmp.eq.f32.partialorder %v1666, 0.0
    %v1706 = vand.u32 %v1666, 2147483648
    %v1707 = vsel %vm1705, %v1706, %v1704
    %v1708 = vrsqrt.pop %v1667
    %v1709 = vmul.f32 %v1667, %v1708
    %vm1710 = vcmp.eq.f32.partialorder %v1667, inf
    %v1711 = vsel %vm1710, %v1667, %v1709
    %vm1712 = vcmp.eq.f32.partialorder %v1667, 0.0
    %v1713 = vand.u32 %v1667, 2147483648
    %v1714 = vsel %vm1712, %v1713, %v1711
    %v1715 = vrsqrt.pop %v1668
    %v1716 = vmul.f32 %v1668, %v1715
    %vm1717 = vcmp.eq.f32.partialorder %v1668, inf
    %v1718 = vsel %vm1717, %v1668, %v1716
    %vm1719 = vcmp.eq.f32.partialorder %v1668, 0.0
    %v1720 = vand.u32 %v1668, 2147483648
    %v1721 = vsel %vm1719, %v1720, %v1718
    %v1722 = vrsqrt.pop %v1669
    %v1723 = vmul.f32 %v1669, %v1722
    %vm1724 = vcmp.eq.f32.partialorder %v1669, inf
    %v1725 = vsel %vm1724, %v1669, %v1723
    %vm1726 = vcmp.eq.f32.partialorder %v1669, 0.0
    %v1727 = vand.u32 %v1669, 2147483648
    %v1728 = vsel %vm1726, %v1727, %v1725
    %v1729 = vrsqrt.pop %v1670
    %v1730 = vmul.f32 %v1670, %v1729
    %vm1731 = vcmp.eq.f32.partialorder %v1670, inf
    %v1732 = vsel %vm1731, %v1670, %v1730
    %vm1733 = vcmp.eq.f32.partialorder %v1670, 0.0
    %v1734 = vand.u32 %v1670, 2147483648
    %v1735 = vsel %vm1733, %v1734, %v1732
    %v1736 = vmul.f32 %v1672, %v1686
    %v1737 = vmul.f32 %v1673, %v1693
    %v1738 = vmul.f32 %v1674, %v1700
    %v1739 = vmul.f32 %v1675, %v1707
    %v1740 = vmul.f32 %v1676, %v1714
    %v1741 = vmul.f32 %v1677, %v1721
    %v1742 = vmul.f32 %v1678, %v1728
    %v1743 = vmul.f32 %v1679, %v1735
    %v1744 = vadd.f32 %v1639, %v1736
    %v1745 = vadd.f32 %v1640, %v1737
    %v1746 = vadd.f32 %v1641, %v1738
    %v1747 = vadd.f32 %v1642, %v1739
    %v1748 = vadd.f32 %v1643, %v1740
    %v1749 = vadd.f32 %v1644, %v1741
    %v1750 = vadd.f32 %v1645, %v1742
    %v1751 = vadd.f32 %v1646, %v1743
    %v1752 = vpack.c.bf16 %v1744, %v1744
    %v1753 = vpack.c.bf16 %v1745, %v1745
    %v1754 = vpack.c.bf16 %v1746, %v1746
    %v1755 = vpack.c.bf16 %v1747, %v1747
    %v1756 = vpack.c.bf16 %v1748, %v1748
    %v1757 = vpack.c.bf16 %v1749, %v1749
    %v1758 = vpack.c.bf16 %v1750, %v1750
    %v1759 = vpack.c.bf16 %v1751, %v1751
    %1760 = vmatprep.subr.bf16.mxu0 %v511
    %1761 = vmatpush1.bf16.xpose.msra.mxu0 %v510
    %1762 = vmatprep.subr.bf16.mxu0 %v513
    %1763 = vmatpush1.bf16.xpose.msra.mxu0 %v512
    %1764 = vmatprep.subr.bf16.mxu0 %v515
    %1765 = vmatpush1.bf16.xpose.msra.mxu0 %v514
    %1766 = vmatprep.subr.bf16.mxu0 %v517
    %1767 = vmatpush1.bf16.xpose.msra.mxu0 %v516
    %1768 = vmatprep.subr.bf16.mxu0 %v519
    %1769 = vmatpush1.bf16.xpose.msra.mxu0 %v518
    %1770 = vmatprep.subr.bf16.mxu0 %v521
    %1771 = vmatpush1.bf16.xpose.msra.mxu0 %v520
    %1772 = vmatprep.subr.bf16.mxu0 %v523
    %1773 = vmatpush1.bf16.xpose.msra.mxu0 %v522
    %1774 = vmatprep.subr.bf16.mxu0 %v525
    %1775 = vmatpush1.bf16.xpose.msra.mxu0 %v524
    %1776 = vmatprep.subr.bf16.mxu0 %v527
    %1777 = vmatpush1.bf16.xpose.msra.mxu0 %v526
    %1778 = vmatprep.subr.bf16.mxu0 %v529
    %1779 = vmatpush1.bf16.xpose.msra.mxu0 %v528
    %1780 = vmatprep.subr.bf16.mxu0 %v531
    %1781 = vmatpush1.bf16.xpose.msra.mxu0 %v530
    %1782 = vmatprep.subr.bf16.mxu0 %v533
    %1783 = vmatpush1.bf16.xpose.msra.mxu0 %v532
    %1784 = vmatprep.subr.bf16.mxu0 %v535
    %1785 = vmatpush1.bf16.xpose.msra.mxu0 %v534
    %1786 = vmatprep.subr.bf16.mxu0 %v537
    %1787 = vmatpush1.bf16.xpose.msra.mxu0 %v536
    %1788 = vmatprep.subr.bf16.mxu0 %v539
    %1789 = vmatpush1.bf16.xpose.msra.mxu0 %v538
    %1790 = vmatprep.subr.bf16.mxu0 %v541
    %1791 = vmatpush1.bf16.xpose.msra.mxu0 %v540
    %1792 = vmatprep.mubr.bf16.mxu0 %v1753
    %1793 = vmatmul.mubr.bf16.gmra.mrb[0].mxu0 %v1752
    %v1794 = vpop.f32.mrb[0].mxu0
    %v1795 = vadd.f32 0.0, %v1794
    %v1796 = vpop.f32.mrb[0].mxu0
    %v1797 = vadd.f32 0.0, %v1796
    %v1798 = vpop.f32.mrb[0].mxu0
    %v1799 = vpop.f32.mrb[0].mxu0
    %1800 = vdwg.mxu0
    %1801 = vmatprep.subr.bf16.mxu0 %v712
    %1802 = vmatpush1.bf16.xpose.msra.mxu0 %v711
    %1803 = vmatprep.subr.bf16.mxu0 %v714
    %1804 = vmatpush1.bf16.xpose.msra.mxu0 %v713
    %1805 = vmatprep.subr.bf16.mxu0 %v716
    %1806 = vmatpush1.bf16.xpose.msra.mxu0 %v715
    %1807 = vmatprep.subr.bf16.mxu0 %v718
    %1808 = vmatpush1.bf16.xpose.msra.mxu0 %v717
    %1809 = vmatprep.subr.bf16.mxu0 %v720
    %1810 = vmatpush1.bf16.xpose.msra.mxu0 %v719
    %1811 = vmatprep.subr.bf16.mxu0 %v722
    %1812 = vmatpush1.bf16.xpose.msra.mxu0 %v721
    %1813 = vmatprep.subr.bf16.mxu0 %v724
    %1814 = vmatpush1.bf16.xpose.msra.mxu0 %v723
    %1815 = vmatprep.subr.bf16.mxu0 %v726
    %1816 = vmatpush1.bf16.xpose.msra.mxu0 %v725
    %1817 = vmatprep.subr.bf16.mxu0 %v728
    %1818 = vmatpush1.bf16.xpose.msra.mxu0 %v727
    %1819 = vmatprep.subr.bf16.mxu0 %v730
    %1820 = vmatpush1.bf16.xpose.msra.mxu0 %v729
    %1821 = vmatprep.subr.bf16.mxu0 %v732
    %1822 = vmatpush1.bf16.xpose.msra.mxu0 %v731
    %1823 = vmatprep.subr.bf16.mxu0 %v734
    %1824 = vmatpush1.bf16.xpose.msra.mxu0 %v733
    %1825 = vmatprep.subr.bf16.mxu0 %v736
    %1826 = vmatpush1.bf16.xpose.msra.mxu0 %v735
    %1827 = vmatprep.subr.bf16.mxu0 %v738
    %1828 = vmatpush1.bf16.xpose.msra.mxu0 %v737
    %1829 = vmatprep.subr.bf16.mxu0 %v740
    %1830 = vmatpush1.bf16.xpose.msra.mxu0 %v739
    %1831 = vmatprep.subr.bf16.mxu0 %v742
    %1832 = vmatpush1.bf16.xpose.msra.mxu0 %v741
    %1833 = vmatprep.mubr.bf16.mxu0 %v1755
    %1834 = vmatmul.mubr.bf16.gmra.mrb[0].mxu0 %v1754
    %v1835 = vpop.f32.mrb[0].mxu0
    %v1836 = vadd.f32 0.0, %v1835
    %v1837 = vpop.f32.mrb[0].mxu0
    %v1838 = vadd.f32 0.0, %v1837
    %v1839 = vpop.f32.mrb[0].mxu0
    %v1840 = vpop.f32.mrb[0].mxu0
    %1841 = vdwg.mxu0
    %1842 = vmatprep.subr.bf16.mxu0 %v913
    %1843 = vmatpush1.bf16.xpose.msra.mxu0 %v912
    %1844 = vmatprep.subr.bf16.mxu0 %v915
    %1845 = vmatpush1.bf16.xpose.msra.mxu0 %v914
    %1846 = vmatprep.subr.bf16.mxu0 %v917
    %1847 = vmatpush1.bf16.xpose.msra.mxu0 %v916
    %1848 = vmatprep.subr.bf16.mxu0 %v919
    %1849 = vmatpush1.bf16.xpose.msra.mxu0 %v918
    %1850 = vmatprep.subr.bf16.mxu0 %v921
    %1851 = vmatpush1.bf16.xpose.msra.mxu0 %v920
    %1852 = vmatprep.subr.bf16.mxu0 %v923
    %1853 = vmatpush1.bf16.xpose.msra.mxu0 %v922
    %1854 = vmatprep.subr.bf16.mxu0 %v925
    %1855 = vmatpush1.bf16.xpose.msra.mxu0 %v924
    %1856 = vmatprep.subr.bf16.mxu0 %v927
    %1857 = vmatpush1.bf16.xpose.msra.mxu0 %v926
    %1858 = vmatprep.subr.bf16.mxu0 %v929
    %1859 = vmatpush1.bf16.xpose.msra.mxu0 %v928
    %1860 = vmatprep.subr.bf16.mxu0 %v931
    %1861 = vmatpush1.bf16.xpose.msra.mxu0 %v930
    %1862 = vmatprep.subr.bf16.mxu0 %v933
    %1863 = vmatpush1.bf16.xpose.msra.mxu0 %v932
    %1864 = vmatprep.subr.bf16.mxu0 %v935
    %1865 = vmatpush1.bf16.xpose.msra.mxu0 %v934
    %1866 = vmatprep.subr.bf16.mxu0 %v937
    %1867 = vmatpush1.bf16.xpose.msra.mxu0 %v936
    %1868 = vmatprep.subr.bf16.mxu0 %v939
    %1869 = vmatpush1.bf16.xpose.msra.mxu0 %v938
    %1870 = vmatprep.subr.bf16.mxu0 %v941
    %1871 = vmatpush1.bf16.xpose.msra.mxu0 %v940
    %1872 = vmatprep.subr.bf16.mxu0 %v943
    %1873 = vmatpush1.bf16.xpose.msra.mxu0 %v942
    %1874 = vmatprep.mubr.bf16.mxu0 %v1757
    %1875 = vmatmul.mubr.bf16.gmra.mrb[0].mxu0 %v1756
    %v1876 = vpop.f32.mrb[0].mxu0
    %v1877 = vadd.f32 0.0, %v1876
    %v1878 = vpop.f32.mrb[0].mxu0
    %v1879 = vadd.f32 0.0, %v1878
    %v1880 = vpop.f32.mrb[0].mxu0
    %v1881 = vpop.f32.mrb[0].mxu0
    %1882 = vdwg.mxu0
    %1883 = vmatprep.subr.bf16.mxu0 %v1114
    %1884 = vmatpush1.bf16.xpose.msra.mxu0 %v1113
    %1885 = vmatprep.subr.bf16.mxu0 %v1116
    %1886 = vmatpush1.bf16.xpose.msra.mxu0 %v1115
    %1887 = vmatprep.subr.bf16.mxu0 %v1118
    %1888 = vmatpush1.bf16.xpose.msra.mxu0 %v1117
    %1889 = vmatprep.subr.bf16.mxu0 %v1120
    %1890 = vmatpush1.bf16.xpose.msra.mxu0 %v1119
    %1891 = vmatprep.subr.bf16.mxu0 %v1122
    %1892 = vmatpush1.bf16.xpose.msra.mxu0 %v1121
    %1893 = vmatprep.subr.bf16.mxu0 %v1124
    %1894 = vmatpush1.bf16.xpose.msra.mxu0 %v1123
    %1895 = vmatprep.subr.bf16.mxu0 %v1126
    %1896 = vmatpush1.bf16.xpose.msra.mxu0 %v1125
    %1897 = vmatprep.subr.bf16.mxu0 %v1128
    %1898 = vmatpush1.bf16.xpose.msra.mxu0 %v1127
    %1899 = vmatprep.subr.bf16.mxu0 %v1130
    %1900 = vmatpush1.bf16.xpose.msra.mxu0 %v1129
    %1901 = vmatprep.subr.bf16.mxu0 %v1132
    %1902 = vmatpush1.bf16.xpose.msra.mxu0 %v1131
    %1903 = vmatprep.subr.bf16.mxu0 %v1134
    %1904 = vmatpush1.bf16.xpose.msra.mxu0 %v1133
    %1905 = vmatprep.subr.bf16.mxu0 %v1136
    %1906 = vmatpush1.bf16.xpose.msra.mxu0 %v1135
    %1907 = vmatprep.subr.bf16.mxu0 %v1138
    %1908 = vmatpush1.bf16.xpose.msra.mxu0 %v1137
    %1909 = vmatprep.subr.bf16.mxu0 %v1140
    %1910 = vmatpush1.bf16.xpose.msra.mxu0 %v1139
    %1911 = vmatprep.subr.bf16.mxu0 %v1142
    %1912 = vmatpush1.bf16.xpose.msra.mxu0 %v1141
    %1913 = vmatprep.subr.bf16.mxu0 %v1144
    %1914 = vmatpush1.bf16.xpose.msra.mxu0 %v1143
    %1915 = vmatprep.mubr.bf16.mxu0 %v1759
    %1916 = vmatmul.mubr.bf16.gmra.mrb[0].mxu0 %v1758
    %v1917 = vpop.f32.mrb[0].mxu0
    %v1918 = vadd.f32 0.0, %v1917
    %v1919 = vpop.f32.mrb[0].mxu0
    %v1920 = vadd.f32 0.0, %v1919
    %v1921 = vpop.f32.mrb[0].mxu0
    %v1922 = vpop.f32.mrb[0].mxu0
    %1923 = vdwg.mxu0
    %v1924 = vmax.f32 %v1795, %v1797
    %v1925 = vmax.f32 %v1836, %v1838
    %v1926 = vmax.f32 %v1877, %v1879
    %v1927 = vmax.f32 %v1918, %v1920
    %v1928 = vld [vmem:[%s2] sm:$0x1]
    %v1929 = vld [vmem:[%s2 + $0x1] sm:$0x1]
    %v1930 = vld [vmem:[%s2 + $0x2] sm:$0x1]
    %v1931 = vld [vmem:[%s2 + $0x3] sm:$0x1]
    %v1936 = vlaneseq
    %v1937 = vshrl.u32 %v1936, 7
    %v1938 = vsub.s32 0, %v1937
    %v1939 = vrot.slane %v1928, %v1938
    %v1940 = vlaneseq
    %v1941 = vshrl.u32 %v1940, 7
    %v1942 = vsub.s32 0, %v1941
    %v1943 = vrot.slane %v1929, %v1942
    %v1944 = vlaneseq
    %v1945 = vshrl.u32 %v1944, 7
    %v1946 = vsub.s32 0, %v1945
    %v1947 = vrot.slane %v1930, %v1946
    %v1948 = vlaneseq
    %v1949 = vshrl.u32 %v1948, 7
    %v1950 = vsub.s32 0, %v1949
    %v1951 = vrot.slane %v1931, %v1950
    %v1956 = vmul.f32 %v1924, %v1939
    %v1957 = vmul.f32 %v1925, %v1943
    %v1958 = vmul.f32 %v1926, %v1947
    %v1959 = vmul.f32 %v1927, %v1951
    %v1960 = vadd.f32 %v1956, %v1957
    %v1961 = vadd.f32 %v1960, %v1958
    %v1962 = vadd.f32 %v1961, %v1959
    %v1963 = vld [vmem:[%s3] sm:$0x1]
    %v1965 = vlaneseq
    %v1966 = vshrl.u32 %v1965, 7
    %v1967 = vsub.s32 0, %v1966
    %v1968 = vrot.slane %v1963, %v1967
    %v1970 = vadd.f32 %v1962, %v1968
    %1971 = vst [vmem:[#allocation8] sm:$0xff] %v1970
    // Predicated region
    $region38: #{tpu_custom_call.1} parent=1 // pred_check
      _
    $region39: #{tpu_custom_call.1} parent=1 // pred_check_branch
      %1973 = sbr.rel (0) target = $region41
    $region40: #{tpu_custom_call.1} parent=1 // pred_region
      %s1975 = ssub.s32 128, 128
      %1976 = vsyncadd [#allocation4], %s1975
      %s1978 = sshll.u32 [#allocation8], 4
      %s1979 = int_to_ptr.vmem [resolvable:$true] %s1978
      %1981 = dma.vmem_to_hbm [thread:$0]  %s1979, 128, %s6, [#allocation4]
    $region41: #{tpu_custom_call.1} parent=1 // pred_fallthru
      _
    // Predicated region
    $region42: #{tpu_custom_call.1} parent=1 // pred_check
      _
    $region43: #{tpu_custom_call.1} parent=1 // pred_check_branch
      %1983 = sbr.rel (0) target = $region45
    $region44: #{tpu_custom_call.1} parent=1 // pred_region
      %1984 = dma.done [#allocation4], 128
    $region45: #{tpu_custom_call.1} parent=1 // pred_fallthru
      _
    %1985 = vsyncpa [#allocation3], 1
    %1986 = vsyncpa [#allocation6], 1
    %1987 = vsyncpa [#allocation4], 1

</llo_original>
